<compile_context>
chip_gen: v6e
topology: v6e:2x2x1
jax: 0.10.0
libtpu: 0.0.40
codegen_flags: <defaults>
</compile_context>

<pallas_src>
import functools

import jax
import jax.numpy as jnp
from jax.experimental import pallas as pl
from jax.experimental.pallas import tpu as pltpu


def _round_up(x, m):
    return ((x + m - 1) // m) * m


# ------------------------------ fused Pallas kernel -------------------------------

def fused_gcn_kernel(a_ref, p_ref, x_ref,
                     w1_ref, b1_ref, w2_ref, b2_ref,
                     w3_ref, b3_ref, w4_ref, b4_ref,
                     fc1w_ref, fc1b_ref, fc2w_ref, fc2b_ref,
                     o_ref, *, num_classes):
    """One grid step == one graph: per-graph A_hat / X blocks, one output row."""
    f32, bf16 = jnp.float32, jnp.bfloat16
    a = a_ref[0]          # [n_pad, n_pad] bf16 (padded rows/cols are zero)
    x = x_ref[0]          # [n_pad, F]  f32

    # ---- conv1: relu(A_hat @ (X @ W1) + b1) -----------------------------------------
    # F == 1 => X @ W1 is a rank-1 outer product: do it on the VPU in f32
    # (conv1_w is passed in f32 for exactly this path).
    if x.shape[1] == 1:
        xw = (x * w1_ref[...]).astype(bf16)                     # [n_pad,1]*[1,dim]
    else:
        xw = jnp.dot(x.astype(bf16), w1_ref[...].astype(bf16),
                     preferred_element_type=f32).astype(bf16)
    h = jnp.dot(a, xw, preferred_element_type=f32)
    h = jnp.maximum(h + b1_ref[...], 0.0)

    # ---- conv2..conv4 (bf16 MXU operands, f32 accumulation, f32 epilogue) ------------
    def gcn_layer(h, w_ref, b_ref):
        hw = jnp.dot(h.astype(bf16), w_ref[...],
                     preferred_element_type=f32).astype(bf16)   # cast once for a @ hw
        agg = jnp.dot(a, hw, preferred_element_type=f32)
        return jnp.maximum(agg + b_ref[...], 0.0)

    h = gcn_layer(h, w2_ref, b2_ref)
    h = gcn_layer(h, w3_ref, b3_ref)
    h = gcn_layer(h, w4_ref, b4_ref)

    # ---- global_mean_pool: per-block masked row mean ---------------------------------
    # p = 1/n_g on this graph's real nodes, 0 on padding (padded rows may hold relu(b)).
    p = p_ref[0]                                                # [n_pad, 1] f32
    pooled = jnp.sum(h * p, axis=0, keepdims=True)              # [1, dim] f32
    pooled = jnp.broadcast_to(pooled, (8, h.shape[1]))          # sublane-aligned head

    # ---- MLP head + log_softmax -------------------------------------------------------
    z = jnp.dot(pooled.astype(bf16), fc1w_ref[...], preferred_element_type=f32)
    z = jnp.maximum(z + fc1b_ref[...], 0.0)
    logits = jnp.dot(z.astype(bf16), fc2w_ref[...], preferred_element_type=f32)
    logits = logits + fc2b_ref[...]

    # mask padded class lanes so they do not pollute the softmax normalization
    lane = jax.lax.broadcasted_iota(jnp.int32, logits.shape, 1)
    logits = jnp.where(lane < num_classes, logits, jnp.finfo(jnp.float32).min)
    m = jnp.max(logits, axis=-1, keepdims=True)
    s = logits - m
    lse = jnp.log(jnp.sum(jnp.exp(s), axis=-1, keepdims=True))
    o_ref[0] = s - lse                                          # [8, c_pad] (rows identical)


# ------------------------------ plain-JAX glue -------------------------------------

def build_graph_blocks(x, edge_index, batch, num_graphs, n_pad):
    """Re-layout a PyG-style concatenated batch into per-graph dense blocks.

    Assumes `batch` is sorted non-decreasing (standard PyG batching) and all edges are
    intra-graph.  Returns:
      a_hat [G, n_pad, n_pad] bf16 : per-graph D^-1/2 (A + I) D^-1/2 (padding is zero)
      pool  [G, n_pad, 1]     f32  : 1/n_g on real nodes, 0 on padding
      x3    [G, n_pad, F]     f32  : per-graph node features
    """
    n, f = x.shape
    g = num_graphs
    counts = jnp.zeros((g,), jnp.int32).at[batch].add(1)
    offsets = jnp.concatenate(
        [jnp.zeros((1,), jnp.int32), jnp.cumsum(counts)[:-1].astype(jnp.int32)])
    rel = jnp.arange(n, dtype=jnp.int32) - offsets[batch]        # node index within graph

    src, dst = edge_index[0], edge_index[1]
    eg = batch[src]                                              # graph of each edge
    a = jnp.zeros((g, n_pad, n_pad), jnp.float32)
    # NOTE: duplicate edges in edge_index are double-counted (differs from PyG gcn_norm).
    a = a.at[eg, dst - offsets[eg], src - offsets[eg]].add(1.0)  # message: src -> dst
    a = a.at[batch, rel, rel].add(1.0)                           # self loops, real nodes
    deg = jnp.sum(a, axis=2)
    dinv = jnp.where(deg > 0.0, jax.lax.rsqrt(deg), 0.0)
    a_hat = (a * dinv[:, :, None] * dinv[:, None, :]).astype(jnp.bfloat16)

    pool = jnp.zeros((g, n_pad, 1), jnp.float32)
    pool = pool.at[batch, rel, 0].set(1.0 / counts[batch].astype(jnp.float32))

    x3 = jnp.zeros((g, n_pad, f), jnp.float32).at[batch, rel].set(x)
    return a_hat, pool, x3


def init_params(key, num_features=1, num_classes=1, num_hidden=32):
    dim = num_hidden
    ks = jax.random.split(key, 12)

    def glorot(k, fan_in, fan_out):
        scale = jnp.sqrt(6.0 / (fan_in + fan_out))
        return jax.random.uniform(k, (fan_in, fan_out), jnp.float32, -scale, scale)

    def bias(k, n):
        return jax.random.uniform(k, (1, n), jnp.float32, -0.1, 0.1)

    return {
        "conv1_w": glorot(ks[0], num_features, dim), "conv1_b": bias(ks[6], dim),
        "conv2_w": glorot(ks[1], dim, dim),          "conv2_b": bias(ks[7], dim),
        "conv3_w": glorot(ks[2], dim, dim),          "conv3_b": bias(ks[8], dim),
        "conv4_w": glorot(ks[3], dim, dim),          "conv4_b": bias(ks[9], dim),
        "fc1_w": glorot(ks[4], dim, dim),            "fc1_b": bias(ks[10], dim),
        "fc2_w": glorot(ks[5], dim, num_classes),    "fc2_b": bias(ks[11], num_classes),
    }


def gcn_forward(params, x, edge_index, batch, num_graphs,
                num_classes=1, num_hidden=32):
    n, num_features = x.shape
    dim = num_hidden
    bf16, f32 = jnp.bfloat16, jnp.float32

    # n_pad: multiple of 128 (lane dim of A_hat's last axis; also covers bf16 sublane
    # packing).  Runs eagerly so the max nodes/graph is concrete.
    counts = jnp.zeros((num_graphs,), jnp.int32).at[batch].add(1)
    n_max = int(jnp.max(counts))
    n_pad = max(_round_up(n_max, 128), 128)
    c_pad = max(_round_up(num_classes, 128), 128)     # lane-dense output store

    a_hat, pool, x3 = build_graph_blocks(x, edge_index, batch, num_graphs, n_pad)

    # pad fc2 to a lane-dense [dim, c_pad]; padded columns are masked in-kernel
    fc2_w = jnp.zeros((dim, c_pad), f32).at[:, :num_classes].set(params["fc2_w"])
    fc2_b = jnp.zeros((1, c_pad), f32).at[:, :num_classes].set(params["fc2_b"])

    kernel = functools.partial(fused_gcn_kernel, num_classes=num_classes)

    def whole(shape):   # grid-invariant (whole-array) operand, never re-fetched
        return pl.BlockSpec(shape, lambda g: (0,) * len(shape))

    in_specs = [
        pl.BlockSpec((1, n_pad, n_pad), lambda g: (g, 0, 0)),          # a_hat block
        pl.BlockSpec((1, n_pad, 1), lambda g: (g, 0, 0)),              # pool vector
        pl.BlockSpec((1, n_pad, num_features), lambda g: (g, 0, 0)),   # x block
        whole((num_features, dim)), whole((1, dim)),    # conv1 (f32: VPU path when F==1)
        whole((dim, dim)), whole((1, dim)),             # conv2
        whole((dim, dim)), whole((1, dim)),             # conv3
        whole((dim, dim)), whole((1, dim)),             # conv4
        whole((dim, dim)), whole((1, dim)),             # fc1
        whole((dim, c_pad)), whole((1, c_pad)),         # fc2 (lane-dense padded)
    ]
    out_specs = pl.BlockSpec((1, 8, c_pad), lambda g: (g, 0, 0))

    # ---- VMEM budget + cost hint ------------------------------------------------------
    blk_bytes = n_pad * n_pad * 2 + n_pad * 4 + n_pad * num_features * 4 + 8 * c_pad * 4
    w_bytes = (num_features * dim * 4 + 4 * dim * dim * 2 + dim * c_pad * 2
               + 5 * dim * 4 + c_pad * 4)
    act_bytes = 8 * n_pad * dim * 4
    vmem_limit = int(min(2 * blk_bytes + 2 * w_bytes + act_bytes + (4 << 20), 100 << 20))

    g = num_graphs
    flops = g * (2 * n_pad * num_features * dim
                 + 4 * 2 * n_pad * n_pad * dim
                 + 3 * 2 * n_pad * dim * dim
                 + 2 * n_pad * dim
                 + 2 * 8 * dim * dim + 2 * 8 * dim * c_pad)
    bytes_accessed = g * blk_bytes + w_bytes
    cost = pl.CostEstimate(flops=int(flops), transcendentals=int(g * 8 * c_pad),
                           bytes_accessed=int(bytes_accessed))

    out = pl.pallas_call(
        kernel,
        out_shape=jax.ShapeDtypeStruct((num_graphs, 8, c_pad), f32),
        grid=(num_graphs,),
        in_specs=in_specs,
        out_specs=out_specs,
        compiler_params=pltpu.CompilerParams(
            dimension_semantics=("parallel",),     # shard graphs across v7x's 2 TCs
            vmem_limit_bytes=vmem_limit),
        cost_estimate=cost,
    )(a_hat, pool, x3,
      params["conv1_w"], params["conv1_b"],
      params["conv2_w"].astype(bf16), params["conv2_b"],
      params["conv3_w"].astype(bf16), params["conv3_b"],
      params["conv4_w"].astype(bf16), params["conv4_b"],
      params["fc1_w"].astype(bf16), params["fc1_b"],
      fc2_w.astype(bf16), fc2_b)

    return out[:, 0, :num_classes]


# ------------------------------ pure-JAX f32 reference ------------------------------

def gcn_reference(params, x, edge_index, batch, num_graphs):
    n = x.shape[0]
    src, dst = edge_index[0], edge_index[1]
    a = jnp.zeros((n, n), jnp.float32).at[dst, src].add(1.0) + jnp.eye(n, dtype=jnp.float32)
    deg = a.sum(1)
    dinv = jnp.where(deg > 0.0, jax.lax.rsqrt(deg), 0.0)
    a_hat = a * dinv[:, None] * dinv[None, :]

    h = x
    for i in (1, 2, 3, 4):
        h = jnp.maximum(a_hat @ (h @ params[f"conv{i}_w"]) + params[f"conv{i}_b"], 0.0)
    onehot = (batch[None, :] == jnp.arange(num_graphs)[:, None]).astype(jnp.float32)
    pooled = (onehot @ h) / jnp.maximum(onehot.sum(1, keepdims=True), 1.0)
    z = jnp.maximum(pooled @ params["fc1_w"] + params["fc1_b"], 0.0)
    logits = z @ params["fc2_w"] + params["fc2_b"]
    return jax.nn.log_softmax(logits, axis=-1)


# ---------------------------------- main ---------------------------------------------

if __name__ == "__main__":
    key = jax.random.PRNGKey(0)
    k_param, k_x = jax.random.split(key)

    num_features, num_classes, num_hidden = 1, 4, 32
    graph_sizes = [6, 5]                      # two small graphs of different sizes
    num_graphs = len(graph_sizes)
    num_nodes = sum(graph_sizes)

    # Node features [N, F]
    x = jax.random.normal(k_x, (num_nodes, num_features), jnp.float32)

    # Undirected ring within each graph, edges listed both ways.
    src_list, dst_list = [], []
    base = 0
    for sz in graph_sizes:
        for i in range(sz):
            u = base + i
            v = base + (i + 1) % sz
            src_list += [u, v]
            dst_list += [v, u]
        base += sz
    edge_index = jnp.array([src_list, dst_list], dtype=jnp.int32)   # [2, E]

    # Graph-assignment vector [N] (sorted, PyG-style)
    batch = jnp.concatenate([jnp.full((sz,), g, jnp.int32)
                             for g, sz in enumerate(graph_sizes)])

    params = init_params(k_param, num_features, num_classes, num_hidden)

    out = gcn_forward(params, x, edge_index, batch, num_graphs,
                      num_classes=num_classes, num_hidden=num_hidden)
    out = jax.block_until_ready(out)
    assert out.shape == (num_graphs, num_classes)

    ref = gcn_reference(params, x, edge_index, batch, num_graphs)
    err = float(jnp.max(jnp.abs(out - ref)))
    assert err < 0.1, f"kernel vs f32 reference mismatch: max |diff| = {err}"
    print("KERNEL_OK")
</pallas_src>

<mosaic_0001>
module attributes {stable_mosaic.version = 11 : i64} {
  func.func @fused_gcn_kernel(%arg0: i32, %arg1: memref<1x128x128xbf16, #tpu.memory_space<vmem>>, %arg2: memref<1x128x1xf32, #tpu.memory_space<vmem>>, %arg3: memref<1x128x1xf32, #tpu.memory_space<vmem>>, %arg4: memref<1x32xf32, #tpu.memory_space<vmem>>, %arg5: memref<1x32xf32, #tpu.memory_space<vmem>>, %arg6: memref<32x32xbf16, #tpu.memory_space<vmem>>, %arg7: memref<1x32xf32, #tpu.memory_space<vmem>>, %arg8: memref<32x32xbf16, #tpu.memory_space<vmem>>, %arg9: memref<1x32xf32, #tpu.memory_space<vmem>>, %arg10: memref<32x32xbf16, #tpu.memory_space<vmem>>, %arg11: memref<1x32xf32, #tpu.memory_space<vmem>>, %arg12: memref<32x32xbf16, #tpu.memory_space<vmem>>, %arg13: memref<1x32xf32, #tpu.memory_space<vmem>>, %arg14: memref<32x128xbf16, #tpu.memory_space<vmem>>, %arg15: memref<1x128xf32, #tpu.memory_space<vmem>>, %arg16: memref<1x8x128xf32, #tpu.memory_space<vmem>>) attributes {dimension_semantics = [#tpu.dimension_semantics<parallel>], iteration_bounds = array<i64: 2>, scalar_prefetch = 0 : i64, scratch_operands = 0 : i64, tpu.core_type = #tpu.core_type<tc>, window_params = [{transform_indices = @transform_0, window_bounds = array<i64: 1, 128, 128>}, {transform_indices = @transform_1, window_bounds = array<i64: 1, 128, 1>}, {transform_indices = @transform_2, window_bounds = array<i64: 1, 128, 1>}, {pipeline_mode = #tpu.pipeline_mode<synchronous>, transform_indices = @transform_3, window_bounds = array<i64: 1, 32>}, {pipeline_mode = #tpu.pipeline_mode<synchronous>, transform_indices = @transform_4, window_bounds = array<i64: 1, 32>}, {pipeline_mode = #tpu.pipeline_mode<synchronous>, transform_indices = @transform_5, window_bounds = array<i64: 32, 32>}, {pipeline_mode = #tpu.pipeline_mode<synchronous>, transform_indices = @transform_6, window_bounds = array<i64: 1, 32>}, {pipeline_mode = #tpu.pipeline_mode<synchronous>, transform_indices = @transform_7, window_bounds = array<i64: 32, 32>}, {pipeline_mode = #tpu.pipeline_mode<synchronous>, transform_indices = @transform_8, window_bounds = array<i64: 1, 32>}, {pipeline_mode = #tpu.pipeline_mode<synchronous>, transform_indices = @transform_9, window_bounds = array<i64: 32, 32>}, {pipeline_mode = #tpu.pipeline_mode<synchronous>, transform_indices = @transform_10, window_bounds = array<i64: 1, 32>}, {pipeline_mode = #tpu.pipeline_mode<synchronous>, transform_indices = @transform_11, window_bounds = array<i64: 32, 32>}, {pipeline_mode = #tpu.pipeline_mode<synchronous>, transform_indices = @transform_12, window_bounds = array<i64: 1, 32>}, {pipeline_mode = #tpu.pipeline_mode<synchronous>, transform_indices = @transform_13, window_bounds = array<i64: 32, 128>}, {pipeline_mode = #tpu.pipeline_mode<synchronous>, transform_indices = @transform_14, window_bounds = array<i64: 1, 128>}, {transform_indices = @transform_15, window_bounds = array<i64: 1, 8, 128>}]} {
    %c0 = arith.constant 0 : index
    %c0_0 = arith.constant 0 : index
    %c0_1 = arith.constant 0 : index
    %0 = vector.load %arg1[%c0, %c0_0, %c0_1] : memref<1x128x128xbf16, #tpu.memory_space<vmem>>, vector<1x128x128xbf16>
    %1 = vector.shape_cast %0 : vector<1x128x128xbf16> to vector<128x128xbf16>
    %c0_2 = arith.constant 0 : index
    %c0_3 = arith.constant 0 : index
    %c0_4 = arith.constant 0 : index
    %2 = vector.load %arg3[%c0_2, %c0_3, %c0_4] : memref<1x128x1xf32, #tpu.memory_space<vmem>>, vector<1x128x1xf32>
    %3 = vector.shape_cast %2 : vector<1x128x1xf32> to vector<128x1xf32>
    %c0_5 = arith.constant 0 : index
    %c0_6 = arith.constant 0 : index
    %4 = vector.load %arg4[%c0_5, %c0_6] : memref<1x32xf32, #tpu.memory_space<vmem>>, vector<1x32xf32>
    %5 = vector.broadcast %3 : vector<128x1xf32> to vector<128x32xf32>
    %6 = vector.broadcast %4 : vector<1x32xf32> to vector<128x32xf32>
    %7 = arith.mulf %5, %6 : vector<128x32xf32>
    %8 = arith.truncf %7 : vector<128x32xf32> to vector<128x32xbf16>
    %cst = arith.constant dense<0.000000e+00> : vector<128x32xf32>
    %9 = tpu.matmul %1, %8, %cst {dimension_numbers = #tpu.dot_dimension_numbers<[1], [0], [0], [1], [0, 0, 1, 1], [], []>} : vector<128x128xbf16>, vector<128x32xbf16>, vector<128x32xf32> -> vector<128x32xf32>
    %c0_7 = arith.constant 0 : index
    %c0_8 = arith.constant 0 : index
    %10 = vector.load %arg5[%c0_7, %c0_8] : memref<1x32xf32, #tpu.memory_space<vmem>>, vector<1x32xf32>
    %11 = vector.broadcast %10 : vector<1x32xf32> to vector<128x32xf32>
    %12 = arith.addf %9, %11 : vector<128x32xf32>
    %cst_9 = arith.constant 0.000000e+00 : f32
    %13 = vector.broadcast %cst_9 : f32 to vector<128x32xf32>
    %14 = arith.maximumf %12, %13 : vector<128x32xf32>
    %15 = arith.truncf %14 : vector<128x32xf32> to vector<128x32xbf16>
    %c0_10 = arith.constant 0 : index
    %c0_11 = arith.constant 0 : index
    %16 = vector.load %arg6[%c0_10, %c0_11] : memref<32x32xbf16, #tpu.memory_space<vmem>>, vector<32x32xbf16>
    %cst_12 = arith.constant dense<0.000000e+00> : vector<128x32xf32>
    %17 = tpu.matmul %15, %16, %cst_12 {dimension_numbers = #tpu.dot_dimension_numbers<[1], [0], [0], [1], [0, 0, 1, 1], [], []>} : vector<128x32xbf16>, vector<32x32xbf16>, vector<128x32xf32> -> vector<128x32xf32>
    %18 = arith.truncf %17 : vector<128x32xf32> to vector<128x32xbf16>
    %cst_13 = arith.constant dense<0.000000e+00> : vector<128x32xf32>
    %19 = tpu.matmul %1, %18, %cst_13 {dimension_numbers = #tpu.dot_dimension_numbers<[1], [0], [0], [1], [0, 0, 1, 1], [], []>} : vector<128x128xbf16>, vector<128x32xbf16>, vector<128x32xf32> -> vector<128x32xf32>
    %c0_14 = arith.constant 0 : index
    %c0_15 = arith.constant 0 : index
    %20 = vector.load %arg7[%c0_14, %c0_15] : memref<1x32xf32, #tpu.memory_space<vmem>>, vector<1x32xf32>
    %21 = vector.broadcast %20 : vector<1x32xf32> to vector<128x32xf32>
    %22 = arith.addf %19, %21 : vector<128x32xf32>
    %cst_16 = arith.constant 0.000000e+00 : f32
    %23 = vector.broadcast %cst_16 : f32 to vector<128x32xf32>
    %24 = arith.maximumf %22, %23 : vector<128x32xf32>
    %25 = arith.truncf %24 : vector<128x32xf32> to vector<128x32xbf16>
    %c0_17 = arith.constant 0 : index
    %c0_18 = arith.constant 0 : index
    %26 = vector.load %arg8[%c0_17, %c0_18] : memref<32x32xbf16, #tpu.memory_space<vmem>>, vector<32x32xbf16>
    %cst_19 = arith.constant dense<0.000000e+00> : vector<128x32xf32>
    %27 = tpu.matmul %25, %26, %cst_19 {dimension_numbers = #tpu.dot_dimension_numbers<[1], [0], [0], [1], [0, 0, 1, 1], [], []>} : vector<128x32xbf16>, vector<32x32xbf16>, vector<128x32xf32> -> vector<128x32xf32>
    %28 = arith.truncf %27 : vector<128x32xf32> to vector<128x32xbf16>
    %cst_20 = arith.constant dense<0.000000e+00> : vector<128x32xf32>
    %29 = tpu.matmul %1, %28, %cst_20 {dimension_numbers = #tpu.dot_dimension_numbers<[1], [0], [0], [1], [0, 0, 1, 1], [], []>} : vector<128x128xbf16>, vector<128x32xbf16>, vector<128x32xf32> -> vector<128x32xf32>
    %c0_21 = arith.constant 0 : index
    %c0_22 = arith.constant 0 : index
    %30 = vector.load %arg9[%c0_21, %c0_22] : memref<1x32xf32, #tpu.memory_space<vmem>>, vector<1x32xf32>
    %31 = vector.broadcast %30 : vector<1x32xf32> to vector<128x32xf32>
    %32 = arith.addf %29, %31 : vector<128x32xf32>
    %cst_23 = arith.constant 0.000000e+00 : f32
    %33 = vector.broadcast %cst_23 : f32 to vector<128x32xf32>
    %34 = arith.maximumf %32, %33 : vector<128x32xf32>
    %35 = arith.truncf %34 : vector<128x32xf32> to vector<128x32xbf16>
    %c0_24 = arith.constant 0 : index
    %c0_25 = arith.constant 0 : index
    %36 = vector.load %arg10[%c0_24, %c0_25] : memref<32x32xbf16, #tpu.memory_space<vmem>>, vector<32x32xbf16>
    %cst_26 = arith.constant dense<0.000000e+00> : vector<128x32xf32>
    %37 = tpu.matmul %35, %36, %cst_26 {dimension_numbers = #tpu.dot_dimension_numbers<[1], [0], [0], [1], [0, 0, 1, 1], [], []>} : vector<128x32xbf16>, vector<32x32xbf16>, vector<128x32xf32> -> vector<128x32xf32>
    %38 = arith.truncf %37 : vector<128x32xf32> to vector<128x32xbf16>
    %cst_27 = arith.constant dense<0.000000e+00> : vector<128x32xf32>
    %39 = tpu.matmul %1, %38, %cst_27 {dimension_numbers = #tpu.dot_dimension_numbers<[1], [0], [0], [1], [0, 0, 1, 1], [], []>} : vector<128x128xbf16>, vector<128x32xbf16>, vector<128x32xf32> -> vector<128x32xf32>
    %c0_28 = arith.constant 0 : index
    %c0_29 = arith.constant 0 : index
    %40 = vector.load %arg11[%c0_28, %c0_29] : memref<1x32xf32, #tpu.memory_space<vmem>>, vector<1x32xf32>
    %41 = vector.broadcast %40 : vector<1x32xf32> to vector<128x32xf32>
    %42 = arith.addf %39, %41 : vector<128x32xf32>
    %cst_30 = arith.constant 0.000000e+00 : f32
    %43 = vector.broadcast %cst_30 : f32 to vector<128x32xf32>
    %44 = arith.maximumf %42, %43 : vector<128x32xf32>
    %c0_31 = arith.constant 0 : index
    %c0_32 = arith.constant 0 : index
    %c0_33 = arith.constant 0 : index
    %45 = vector.load %arg2[%c0_31, %c0_32, %c0_33] : memref<1x128x1xf32, #tpu.memory_space<vmem>>, vector<1x128x1xf32>
    %46 = vector.shape_cast %45 : vector<1x128x1xf32> to vector<128x1xf32>
    %47 = vector.broadcast %46 : vector<128x1xf32> to vector<128x32xf32>
    %48 = arith.mulf %44, %47 : vector<128x32xf32>
    %cst_34 = arith.constant dense<0.000000e+00> : vector<32xf32>
    %49 = vector.multi_reduction <add>, %48, %cst_34 [0] : vector<128x32xf32> to vector<32xf32>
    %50 = vector.shape_cast %49 : vector<32xf32> to vector<1x32xf32>
    %51 = vector.shape_cast %50 : vector<1x32xf32> to vector<1x32xf32>
    %52 = vector.broadcast %51 : vector<1x32xf32> to vector<8x32xf32>
    %53 = arith.truncf %52 : vector<8x32xf32> to vector<8x32xbf16>
    %c0_35 = arith.constant 0 : index
    %c0_36 = arith.constant 0 : index
    %54 = vector.load %arg12[%c0_35, %c0_36] : memref<32x32xbf16, #tpu.memory_space<vmem>>, vector<32x32xbf16>
    %cst_37 = arith.constant dense<0.000000e+00> : vector<8x32xf32>
    %55 = tpu.matmul %53, %54, %cst_37 {dimension_numbers = #tpu.dot_dimension_numbers<[1], [0], [0], [1], [0, 0, 1, 1], [], []>} : vector<8x32xbf16>, vector<32x32xbf16>, vector<8x32xf32> -> vector<8x32xf32>
    %c0_38 = arith.constant 0 : index
    %c0_39 = arith.constant 0 : index
    %56 = vector.load %arg13[%c0_38, %c0_39] : memref<1x32xf32, #tpu.memory_space<vmem>>, vector<1x32xf32>
    %57 = vector.broadcast %56 : vector<1x32xf32> to vector<8x32xf32>
    %58 = arith.addf %55, %57 : vector<8x32xf32>
    %cst_40 = arith.constant 0.000000e+00 : f32
    %59 = vector.broadcast %cst_40 : f32 to vector<8x32xf32>
    %60 = arith.maximumf %58, %59 : vector<8x32xf32>
    %61 = arith.truncf %60 : vector<8x32xf32> to vector<8x32xbf16>
    %c0_41 = arith.constant 0 : index
    %c0_42 = arith.constant 0 : index
    %62 = vector.load %arg14[%c0_41, %c0_42] : memref<32x128xbf16, #tpu.memory_space<vmem>>, vector<32x128xbf16>
    %cst_43 = arith.constant dense<0.000000e+00> : vector<8x128xf32>
    %63 = tpu.matmul %61, %62, %cst_43 {dimension_numbers = #tpu.dot_dimension_numbers<[1], [0], [0], [1], [0, 0, 1, 1], [], []>} : vector<8x32xbf16>, vector<32x128xbf16>, vector<8x128xf32> -> vector<8x128xf32>
    %c0_44 = arith.constant 0 : index
    %c0_45 = arith.constant 0 : index
    %64 = vector.load %arg15[%c0_44, %c0_45] : memref<1x128xf32, #tpu.memory_space<vmem>>, vector<1x128xf32>
    %65 = vector.broadcast %64 : vector<1x128xf32> to vector<8x128xf32>
    %66 = arith.addf %63, %65 : vector<8x128xf32>
    %67 = tpu.iota {dimensions = array<i32: 1>} : vector<8x128xi32>
    %c4_i32 = arith.constant 4 : i32
    %68 = vector.broadcast %c4_i32 : i32 to vector<8x128xi32>
    %69 = arith.cmpi slt, %67, %68 : vector<8x128xi32>
    %cst_46 = arith.constant -3.40282347E+38 : f32
    %70 = vector.broadcast %cst_46 : f32 to vector<8x128xf32>
    %71 = arith.select %69, %66, %70 : vector<8x128xi1>, vector<8x128xf32>
    %cst_47 = arith.constant dense<0xFF800000> : vector<8xf32>
    %72 = vector.multi_reduction <maximumf>, %71, %cst_47 [1] : vector<8x128xf32> to vector<8xf32>
    %73 = vector.shape_cast %72 : vector<8xf32> to vector<8x1xf32>
    %74 = vector.broadcast %73 : vector<8x1xf32> to vector<8x128xf32>
    %75 = arith.subf %71, %74 : vector<8x128xf32>
    %76 = math.exp %75 : vector<8x128xf32>
    %cst_48 = arith.constant dense<0.000000e+00> : vector<8xf32>
    %77 = vector.multi_reduction <add>, %76, %cst_48 [1] : vector<8x128xf32> to vector<8xf32>
    %78 = vector.shape_cast %77 : vector<8xf32> to vector<8x1xf32>
    %79 = math.log %78 : vector<8x1xf32>
    %80 = vector.broadcast %79 : vector<8x1xf32> to vector<8x128xf32>
    %81 = arith.subf %75, %80 : vector<8x128xf32>
    %c0_49 = arith.constant 0 : index
    %c0_50 = arith.constant 0 : index
    %c0_51 = arith.constant 0 : index
    %82 = vector.load %arg16[%c0_49, %c0_50, %c0_51] : memref<1x8x128xf32, #tpu.memory_space<vmem>>, vector<1x8x128xf32>
    %83 = vector.shape_cast %82 : vector<1x8x128xf32> to vector<8x128xf32>
    %84 = vector.shape_cast %81 : vector<8x128xf32> to vector<1x8x128xf32>
    tpu.vector_store %arg16[%c0_49, %c0_50, %c0_51], %84 {strides = array<i32>} : memref<1x8x128xf32, #tpu.memory_space<vmem>>, vector<1x8x128xf32>,
    return
  }
  func.func @transform_0(%arg0: i32) -> (i32, i32, i32) {
    %c0_i32 = arith.constant 0 : i32
    %c0_i32_0 = arith.constant 0 : i32
    %c0_i32_1 = arith.constant 0 : i32
    return %arg0, %c0_i32, %c0_i32_0 : i32, i32, i32
  }
  func.func @transform_1(%arg0: i32) -> (i32, i32, i32) {
    %c0_i32 = arith.constant 0 : i32
    %c0_i32_0 = arith.constant 0 : i32
    %c0_i32_1 = arith.constant 0 : i32
    return %arg0, %c0_i32, %c0_i32_0 : i32, i32, i32
  }
  func.func @transform_2(%arg0: i32) -> (i32, i32, i32) {
    %c0_i32 = arith.constant 0 : i32
    %c0_i32_0 = arith.constant 0 : i32
    %c0_i32_1 = arith.constant 0 : i32
    return %arg0, %c0_i32, %c0_i32_0 : i32, i32, i32
  }
  func.func @transform_3(%arg0: i32) -> (i32, i32) {
    %c0_i32 = arith.constant 0 : i32
    %c0_i32_0 = arith.constant 0 : i32
    %c0_i32_1 = arith.constant 0 : i32
    return %c0_i32, %c0_i32_0 : i32, i32
  }
  func.func @transform_4(%arg0: i32) -> (i32, i32) {
    %c0_i32 = arith.constant 0 : i32
    %c0_i32_0 = arith.constant 0 : i32
    %c0_i32_1 = arith.constant 0 : i32
    return %c0_i32, %c0_i32_0 : i32, i32
  }
  func.func @transform_5(%arg0: i32) -> (i32, i32) {
    %c0_i32 = arith.constant 0 : i32
    %c0_i32_0 = arith.constant 0 : i32
    %c0_i32_1 = arith.constant 0 : i32
    return %c0_i32, %c0_i32_0 : i32, i32
  }
  func.func @transform_6(%arg0: i32) -> (i32, i32) {
    %c0_i32 = arith.constant 0 : i32
    %c0_i32_0 = arith.constant 0 : i32
    %c0_i32_1 = arith.constant 0 : i32
    return %c0_i32, %c0_i32_0 : i32, i32
  }
  func.func @transform_7(%arg0: i32) -> (i32, i32) {
    %c0_i32 = arith.constant 0 : i32
    %c0_i32_0 = arith.constant 0 : i32
    %c0_i32_1 = arith.constant 0 : i32
    return %c0_i32, %c0_i32_0 : i32, i32
  }
  func.func @transform_8(%arg0: i32) -> (i32, i32) {
    %c0_i32 = arith.constant 0 : i32
    %c0_i32_0 = arith.constant 0 : i32
    %c0_i32_1 = arith.constant 0 : i32
    return %c0_i32, %c0_i32_0 : i32, i32
  }
  func.func @transform_9(%arg0: i32) -> (i32, i32) {
    %c0_i32 = arith.constant 0 : i32
    %c0_i32_0 = arith.constant 0 : i32
    %c0_i32_1 = arith.constant 0 : i32
    return %c0_i32, %c0_i32_0 : i32, i32
  }
  func.func @transform_10(%arg0: i32) -> (i32, i32) {
    %c0_i32 = arith.constant 0 : i32
    %c0_i32_0 = arith.constant 0 : i32
    %c0_i32_1 = arith.constant 0 : i32
    return %c0_i32, %c0_i32_0 : i32, i32
  }
  func.func @transform_11(%arg0: i32) -> (i32, i32) {
    %c0_i32 = arith.constant 0 : i32
    %c0_i32_0 = arith.constant 0 : i32
    %c0_i32_1 = arith.constant 0 : i32
    return %c0_i32, %c0_i32_0 : i32, i32
  }
  func.func @transform_12(%arg0: i32) -> (i32, i32) {
    %c0_i32 = arith.constant 0 : i32
    %c0_i32_0 = arith.constant 0 : i32
    %c0_i32_1 = arith.constant 0 : i32
    return %c0_i32, %c0_i32_0 : i32, i32
  }
  func.func @transform_13(%arg0: i32) -> (i32, i32) {
    %c0_i32 = arith.constant 0 : i32
    %c0_i32_0 = arith.constant 0 : i32
    %c0_i32_1 = arith.constant 0 : i32
    return %c0_i32, %c0_i32_0 : i32, i32
  }
  func.func @transform_14(%arg0: i32) -> (i32, i32) {
    %c0_i32 = arith.constant 0 : i32
    %c0_i32_0 = arith.constant 0 : i32
    %c0_i32_1 = arith.constant 0 : i32
    return %c0_i32, %c0_i32_0 : i32, i32
  }
  func.func @transform_15(%arg0: i32) -> (i32, i32, i32) {
    %c0_i32 = arith.constant 0 : i32
    %c0_i32_0 = arith.constant 0 : i32
    %c0_i32_1 = arith.constant 0 : i32
    return %arg0, %c0_i32, %c0_i32_0 : i32, i32, i32
  }
}

</mosaic_0001>

<llo_original>
// kernel: tpu_custom_call.1
$region0: #{tpu_custom_call.1}
  #allocation0 [shape = 'u32[]', space=smem, size = 0x4, offset = 0x4, fixed_abs, tag = 'smem constant byte address 0x4 - core index']
  #allocation1 [shape = 'u32[144,128]{1,0:T(1,128)}', space=vmem, size = 0x12000, scoped, tag = 'internal scratch']
  %s0 = inlined_call_operand.vmem [shape: bf16[2,128,128], index: 0, kind: input, shape index: {}]
  %s1 = inlined_call_operand.vmem [shape: f32[2,128,1], index: 1, kind: input, shape index: {}]
  %s2 = inlined_call_operand.vmem [shape: f32[2,128,1], index: 2, kind: input, shape index: {}]
  %s3 = inlined_call_operand.vmem [shape: f32[1,32], index: 3, kind: input, shape index: {}]
  %s4 = inlined_call_operand.vmem [shape: f32[1,32], index: 4, kind: input, shape index: {}]
  %s5 = inlined_call_operand.vmem [shape: bf16[32,32], index: 5, kind: input, shape index: {}]
  %s6 = inlined_call_operand.vmem [shape: f32[1,32], index: 6, kind: input, shape index: {}]
  %s7 = inlined_call_operand.vmem [shape: bf16[32,32], index: 7, kind: input, shape index: {}]
  %s8 = inlined_call_operand.vmem [shape: f32[1,32], index: 8, kind: input, shape index: {}]
  %s9 = inlined_call_operand.vmem [shape: bf16[32,32], index: 9, kind: input, shape index: {}]
  %s10 = inlined_call_operand.vmem [shape: f32[1,32], index: 10, kind: input, shape index: {}]
  %s11 = inlined_call_operand.vmem [shape: bf16[32,32], index: 11, kind: input, shape index: {}]
  %s12 = inlined_call_operand.vmem [shape: f32[1,32], index: 12, kind: input, shape index: {}]
  %s13 = inlined_call_operand.vmem [shape: bf16[32,128], index: 13, kind: input, shape index: {}]
  %s14 = inlined_call_operand.vmem [shape: f32[1,128], index: 14, kind: input, shape index: {}]
  %s15 = inlined_call_operand.hbm [shape: f32[2,8,128], index: 15, kind: output, shape index: {}]
  %s16 = sld [smem:[#allocation0]]
  $region93: #{tpu_custom_call.1} parent=0
    _
  %s18 = ssub.s32 1, %s16
  %s19 = scalar_select 0, %s18, %s16
  $region1: #{tpu_custom_call.1} parent=0
    #allocation2 [shape = 'u8[8192]{0}', space=vmem, size = 0x2000, scoped, tag = 'output window, operand 0']
    #allocation3 [shape = 's32[2]{0}', space=sflag, size = 0x8, scoped, tag = 'scoped memory for tpu_custom_call.1']
    %20 = vsyncpa [#allocation3], 0
    %s21 = scalar_lea.sflag [#allocation3], 1
    %22 = vsyncpa %s21, 0
    loop: start=0, step=1, limit=4
    $region2: #{tpu_custom_call.1} parent=1 // loop_pre_header
      _
    $region3: #{tpu_custom_call.1} parent=1 // loop_header
      %s24 = sphi 0, %s28
      %p25 = scmp.ge.s32.totalorder %s24, 4
      %s34 = sphi 0, %s36
      %s37 = sphi 0, %s34
      %s38 = sphi 0, %s37
      %s54 = sphi 0, %s38
      %s60 = sphi 0, %s62
      %s63 = sphi 0, %s60
      %s64 = sphi 0, %s63
      %s80 = sphi 0, %s64
      %s86 = sphi 0, %s88
      %s89 = sphi 0, %s86
      %s90 = sphi 0, %s89
      %s106 = sphi 0, %s90
      %s110 = sphi 0, %s110
      %s112 = sphi 0, %s110
      %s113 = sphi 0, %s112
      %s127 = sphi 0, %s113
      %s131 = sphi 0, %s131
      %s133 = sphi 0, %s131
      %s134 = sphi 0, %s133
      %s148 = sphi 0, %s134
      %s152 = sphi 0, %s152
      %s154 = sphi 0, %s152
      %s155 = sphi 0, %s154
      %s169 = sphi 0, %s155
      %s173 = sphi 0, %s173
      %s175 = sphi 0, %s173
      %s176 = sphi 0, %s175
      %s190 = sphi 0, %s176
      %s194 = sphi 0, %s194
      %s196 = sphi 0, %s194
      %s197 = sphi 0, %s196
      %s211 = sphi 0, %s197
      %s215 = sphi 0, %s215
      %s217 = sphi 0, %s215
      %s218 = sphi 0, %s217
      %s232 = sphi 0, %s218
      %s236 = sphi 0, %s236
      %s238 = sphi 0, %s236
      %s239 = sphi 0, %s238
      %s253 = sphi 0, %s239
      %s257 = sphi 0, %s257
      %s259 = sphi 0, %s257
      %s260 = sphi 0, %s259
      %s274 = sphi 0, %s260
      %s278 = sphi 0, %s278
      %s280 = sphi 0, %s278
      %s281 = sphi 0, %s280
      %s295 = sphi 0, %s281
      %s299 = sphi 0, %s299
      %s301 = sphi 0, %s299
      %s302 = sphi 0, %s301
      %s316 = sphi 0, %s302
      %s320 = sphi 0, %s320
      %s322 = sphi 0, %s320
      %s323 = sphi 0, %s322
      %s337 = sphi 0, %s323
      %s341 = sphi 0, %s341
      %s343 = sphi 0, %s341
      %s344 = sphi 0, %s343
      %s358 = sphi 0, %s344
      %s364 = sphi 0, %s366
      %s367 = sphi 0, %s364
      %s368 = sphi 0, %s367
      %s384 = sphi 0, %s368
    $region4: #{tpu_custom_call.1} parent=1 // loop_header_branch
      %27 = sbr.rel (%p25) target = $region8
    $region5: #{tpu_custom_call.1} parent=1 // loop_body
      %s29 = ssub.s32 %s24, 1
      %s30 = ssub.s32 %s24, 2
      %s31 = sadd.s32 %s24, 1
      %s32 = ssub.s32 %s24, %s31
      %p33 = scmp.eq.s32.totalorder %s32, 0
      %s35 = sadd.s32 %s34, 1
      %s36 = scalar_select %p33, %s34, %s35
      %p39 = pneg %p33
      %p40 = scmp.eq.s32.totalorder %s24, 1
      %p41 = por %p39, %p40
      %p42 = scmp.ne.s32.totalorder %s34, %s37
      %p43 = scmp.eq.s32.totalorder %s24, 0
      %p44 = por %p42, %p43
      %p45 = scmp.ne.s32.totalorder %s34, %s37
      %p46 = scmp.eq.s32.totalorder %s29, 1
      %p47 = por %p45, %p46
      %p48 = scmp.ne.s32.totalorder %s37, %s38
      %p49 = scmp.eq.s32.totalorder %s29, 0
      %p50 = por %p48, %p49
      %p51 = scmp.ne.s32.totalorder %s37, %s38
      %p52 = scmp.eq.s32.totalorder %s30, 1
      %p53 = por %p51, %p52
      %p55 = scmp.ne.s32.totalorder %s38, %s54
      %p56 = scmp.eq.s32.totalorder %s30, 0
      %p57 = por %p55, %p56
      %s58 = ssub.s32 %s24, %s31
      %p59 = scmp.eq.s32.totalorder %s58, 0
      %s61 = sadd.s32 %s60, 1
      %s62 = scalar_select %p59, %s60, %s61
      %p65 = pneg %p59
      %p66 = scmp.eq.s32.totalorder %s24, 1
      %p67 = por %p65, %p66
      %p68 = scmp.ne.s32.totalorder %s60, %s63
      %p69 = scmp.eq.s32.totalorder %s24, 0
      %p70 = por %p68, %p69
      %p71 = scmp.ne.s32.totalorder %s60, %s63
      %p72 = scmp.eq.s32.totalorder %s29, 1
      %p73 = por %p71, %p72
      %p74 = scmp.ne.s32.totalorder %s63, %s64
      %p75 = scmp.eq.s32.totalorder %s29, 0
      %p76 = por %p74, %p75
      %p77 = scmp.ne.s32.totalorder %s63, %s64
      %p78 = scmp.eq.s32.totalorder %s30, 1
      %p79 = por %p77, %p78
      %p81 = scmp.ne.s32.totalorder %s64, %s80
      %p82 = scmp.eq.s32.totalorder %s30, 0
      %p83 = por %p81, %p82
      %s84 = ssub.s32 %s24, %s31
      %p85 = scmp.eq.s32.totalorder %s84, 0
      %s87 = sadd.s32 %s86, 1
      %s88 = scalar_select %p85, %s86, %s87
      %p91 = pneg %p85
      %p92 = scmp.eq.s32.totalorder %s24, 1
      %p93 = por %p91, %p92
      %p94 = scmp.ne.s32.totalorder %s86, %s89
      %p95 = scmp.eq.s32.totalorder %s24, 0
      %p96 = por %p94, %p95
      %p97 = scmp.ne.s32.totalorder %s86, %s89
      %p98 = scmp.eq.s32.totalorder %s29, 1
      %p99 = por %p97, %p98
      %p100 = scmp.ne.s32.totalorder %s89, %s90
      %p101 = scmp.eq.s32.totalorder %s29, 0
      %p102 = por %p100, %p101
      %p103 = scmp.ne.s32.totalorder %s89, %s90
      %p104 = scmp.eq.s32.totalorder %s30, 1
      %p105 = por %p103, %p104
      %p107 = scmp.ne.s32.totalorder %s90, %s106
      %p108 = scmp.eq.s32.totalorder %s30, 0
      %p109 = por %p107, %p108
      %s111 = sadd.s32 %s110, 1
      %p114 = scmp.eq.s32.totalorder %s24, 1
      %p115 = scmp.ne.s32.totalorder %s110, %s112
      %p116 = scmp.eq.s32.totalorder %s24, 0
      %p117 = por %p115, %p116
      %p118 = scmp.ne.s32.totalorder %s110, %s112
      %p119 = scmp.eq.s32.totalorder %s29, 1
      %p120 = por %p118, %p119
      %p121 = scmp.ne.s32.totalorder %s112, %s113
      %p122 = scmp.eq.s32.totalorder %s29, 0
      %p123 = por %p121, %p122
      %p124 = scmp.ne.s32.totalorder %s112, %s113
      %p125 = scmp.eq.s32.totalorder %s30, 1
      %p126 = por %p124, %p125
      %p128 = scmp.ne.s32.totalorder %s113, %s127
      %p129 = scmp.eq.s32.totalorder %s30, 0
      %p130 = por %p128, %p129
      %s132 = sadd.s32 %s131, 1
      %p135 = scmp.eq.s32.totalorder %s24, 1
      %p136 = scmp.ne.s32.totalorder %s131, %s133
      %p137 = scmp.eq.s32.totalorder %s24, 0
      %p138 = por %p136, %p137
      %p139 = scmp.ne.s32.totalorder %s131, %s133
      %p140 = scmp.eq.s32.totalorder %s29, 1
      %p141 = por %p139, %p140
      %p142 = scmp.ne.s32.totalorder %s133, %s134
      %p143 = scmp.eq.s32.totalorder %s29, 0
      %p144 = por %p142, %p143
      %p145 = scmp.ne.s32.totalorder %s133, %s134
      %p146 = scmp.eq.s32.totalorder %s30, 1
      %p147 = por %p145, %p146
      %p149 = scmp.ne.s32.totalorder %s134, %s148
      %p150 = scmp.eq.s32.totalorder %s30, 0
      %p151 = por %p149, %p150
      %s153 = sadd.s32 %s152, 1
      %p156 = scmp.eq.s32.totalorder %s24, 1
      %p157 = scmp.ne.s32.totalorder %s152, %s154
      %p158 = scmp.eq.s32.totalorder %s24, 0
      %p159 = por %p157, %p158
      %p160 = scmp.ne.s32.totalorder %s152, %s154
      %p161 = scmp.eq.s32.totalorder %s29, 1
      %p162 = por %p160, %p161
      %p163 = scmp.ne.s32.totalorder %s154, %s155
      %p164 = scmp.eq.s32.totalorder %s29, 0
      %p165 = por %p163, %p164
      %p166 = scmp.ne.s32.totalorder %s154, %s155
      %p167 = scmp.eq.s32.totalorder %s30, 1
      %p168 = por %p166, %p167
      %p170 = scmp.ne.s32.totalorder %s155, %s169
      %p171 = scmp.eq.s32.totalorder %s30, 0
      %p172 = por %p170, %p171
      %s174 = sadd.s32 %s173, 1
      %p177 = scmp.eq.s32.totalorder %s24, 1
      %p178 = scmp.ne.s32.totalorder %s173, %s175
      %p179 = scmp.eq.s32.totalorder %s24, 0
      %p180 = por %p178, %p179
      %p181 = scmp.ne.s32.totalorder %s173, %s175
      %p182 = scmp.eq.s32.totalorder %s29, 1
      %p183 = por %p181, %p182
      %p184 = scmp.ne.s32.totalorder %s175, %s176
      %p185 = scmp.eq.s32.totalorder %s29, 0
      %p186 = por %p184, %p185
      %p187 = scmp.ne.s32.totalorder %s175, %s176
      %p188 = scmp.eq.s32.totalorder %s30, 1
      %p189 = por %p187, %p188
      %p191 = scmp.ne.s32.totalorder %s176, %s190
      %p192 = scmp.eq.s32.totalorder %s30, 0
      %p193 = por %p191, %p192
      %s195 = sadd.s32 %s194, 1
      %p198 = scmp.eq.s32.totalorder %s24, 1
      %p199 = scmp.ne.s32.totalorder %s194, %s196
      %p200 = scmp.eq.s32.totalorder %s24, 0
      %p201 = por %p199, %p200
      %p202 = scmp.ne.s32.totalorder %s194, %s196
      %p203 = scmp.eq.s32.totalorder %s29, 1
      %p204 = por %p202, %p203
      %p205 = scmp.ne.s32.totalorder %s196, %s197
      %p206 = scmp.eq.s32.totalorder %s29, 0
      %p207 = por %p205, %p206
      %p208 = scmp.ne.s32.totalorder %s196, %s197
      %p209 = scmp.eq.s32.totalorder %s30, 1
      %p210 = por %p208, %p209
      %p212 = scmp.ne.s32.totalorder %s197, %s211
      %p213 = scmp.eq.s32.totalorder %s30, 0
      %p214 = por %p212, %p213
      %s216 = sadd.s32 %s215, 1
      %p219 = scmp.eq.s32.totalorder %s24, 1
      %p220 = scmp.ne.s32.totalorder %s215, %s217
      %p221 = scmp.eq.s32.totalorder %s24, 0
      %p222 = por %p220, %p221
      %p223 = scmp.ne.s32.totalorder %s215, %s217
      %p224 = scmp.eq.s32.totalorder %s29, 1
      %p225 = por %p223, %p224
      %p226 = scmp.ne.s32.totalorder %s217, %s218
      %p227 = scmp.eq.s32.totalorder %s29, 0
      %p228 = por %p226, %p227
      %p229 = scmp.ne.s32.totalorder %s217, %s218
      %p230 = scmp.eq.s32.totalorder %s30, 1
      %p231 = por %p229, %p230
      %p233 = scmp.ne.s32.totalorder %s218, %s232
      %p234 = scmp.eq.s32.totalorder %s30, 0
      %p235 = por %p233, %p234
      %s237 = sadd.s32 %s236, 1
      %p240 = scmp.eq.s32.totalorder %s24, 1
      %p241 = scmp.ne.s32.totalorder %s236, %s238
      %p242 = scmp.eq.s32.totalorder %s24, 0
      %p243 = por %p241, %p242
      %p244 = scmp.ne.s32.totalorder %s236, %s238
      %p245 = scmp.eq.s32.totalorder %s29, 1
      %p246 = por %p244, %p245
      %p247 = scmp.ne.s32.totalorder %s238, %s239
      %p248 = scmp.eq.s32.totalorder %s29, 0
      %p249 = por %p247, %p248
      %p250 = scmp.ne.s32.totalorder %s238, %s239
      %p251 = scmp.eq.s32.totalorder %s30, 1
      %p252 = por %p250, %p251
      %p254 = scmp.ne.s32.totalorder %s239, %s253
      %p255 = scmp.eq.s32.totalorder %s30, 0
      %p256 = por %p254, %p255
      %s258 = sadd.s32 %s257, 1
      %p261 = scmp.eq.s32.totalorder %s24, 1
      %p262 = scmp.ne.s32.totalorder %s257, %s259
      %p263 = scmp.eq.s32.totalorder %s24, 0
      %p264 = por %p262, %p263
      %p265 = scmp.ne.s32.totalorder %s257, %s259
      %p266 = scmp.eq.s32.totalorder %s29, 1
      %p267 = por %p265, %p266
      %p268 = scmp.ne.s32.totalorder %s259, %s260
      %p269 = scmp.eq.s32.totalorder %s29, 0
      %p270 = por %p268, %p269
      %p271 = scmp.ne.s32.totalorder %s259, %s260
      %p272 = scmp.eq.s32.totalorder %s30, 1
      %p273 = por %p271, %p272
      %p275 = scmp.ne.s32.totalorder %s260, %s274
      %p276 = scmp.eq.s32.totalorder %s30, 0
      %p277 = por %p275, %p276
      %s279 = sadd.s32 %s278, 1
      %p282 = scmp.eq.s32.totalorder %s24, 1
      %p283 = scmp.ne.s32.totalorder %s278, %s280
      %p284 = scmp.eq.s32.totalorder %s24, 0
      %p285 = por %p283, %p284
      %p286 = scmp.ne.s32.totalorder %s278, %s280
      %p287 = scmp.eq.s32.totalorder %s29, 1
      %p288 = por %p286, %p287
      %p289 = scmp.ne.s32.totalorder %s280, %s281
      %p290 = scmp.eq.s32.totalorder %s29, 0
      %p291 = por %p289, %p290
      %p292 = scmp.ne.s32.totalorder %s280, %s281
      %p293 = scmp.eq.s32.totalorder %s30, 1
      %p294 = por %p292, %p293
      %p296 = scmp.ne.s32.totalorder %s281, %s295
      %p297 = scmp.eq.s32.totalorder %s30, 0
      %p298 = por %p296, %p297
      %s300 = sadd.s32 %s299, 1
      %p303 = scmp.eq.s32.totalorder %s24, 1
      %p304 = scmp.ne.s32.totalorder %s299, %s301
      %p305 = scmp.eq.s32.totalorder %s24, 0
      %p306 = por %p304, %p305
      %p307 = scmp.ne.s32.totalorder %s299, %s301
      %p308 = scmp.eq.s32.totalorder %s29, 1
      %p309 = por %p307, %p308
      %p310 = scmp.ne.s32.totalorder %s301, %s302
      %p311 = scmp.eq.s32.totalorder %s29, 0
      %p312 = por %p310, %p311
      %p313 = scmp.ne.s32.totalorder %s301, %s302
      %p314 = scmp.eq.s32.totalorder %s30, 1
      %p315 = por %p313, %p314
      %p317 = scmp.ne.s32.totalorder %s302, %s316
      %p318 = scmp.eq.s32.totalorder %s30, 0
      %p319 = por %p317, %p318
      %s321 = sadd.s32 %s320, 1
      %p324 = scmp.eq.s32.totalorder %s24, 1
      %p325 = scmp.ne.s32.totalorder %s320, %s322
      %p326 = scmp.eq.s32.totalorder %s24, 0
      %p327 = por %p325, %p326
      %p328 = scmp.ne.s32.totalorder %s320, %s322
      %p329 = scmp.eq.s32.totalorder %s29, 1
      %p330 = por %p328, %p329
      %p331 = scmp.ne.s32.totalorder %s322, %s323
      %p332 = scmp.eq.s32.totalorder %s29, 0
      %p333 = por %p331, %p332
      %p334 = scmp.ne.s32.totalorder %s322, %s323
      %p335 = scmp.eq.s32.totalorder %s30, 1
      %p336 = por %p334, %p335
      %p338 = scmp.ne.s32.totalorder %s323, %s337
      %p339 = scmp.eq.s32.totalorder %s30, 0
      %p340 = por %p338, %p339
      %s342 = sadd.s32 %s341, 1
      %p345 = scmp.eq.s32.totalorder %s24, 1
      %p346 = scmp.ne.s32.totalorder %s341, %s343
      %p347 = scmp.eq.s32.totalorder %s24, 0
      %p348 = por %p346, %p347
      %p349 = scmp.ne.s32.totalorder %s341, %s343
      %p350 = scmp.eq.s32.totalorder %s29, 1
      %p351 = por %p349, %p350
      %p352 = scmp.ne.s32.totalorder %s343, %s344
      %p353 = scmp.eq.s32.totalorder %s29, 0
      %p354 = por %p352, %p353
      %p355 = scmp.ne.s32.totalorder %s343, %s344
      %p356 = scmp.eq.s32.totalorder %s30, 1
      %p357 = por %p355, %p356
      %p359 = scmp.ne.s32.totalorder %s344, %s358
      %p360 = scmp.eq.s32.totalorder %s30, 0
      %p361 = por %p359, %p360
      %s362 = ssub.s32 %s24, %s31
      %p363 = scmp.eq.s32.totalorder %s362, 0
      %s365 = sadd.s32 %s364, 1
      %s366 = scalar_select %p363, %s364, %s365
      %p369 = pneg %p363
      %p370 = scmp.eq.s32.totalorder %s24, 1
      %p371 = por %p369, %p370
      %p372 = scmp.ne.s32.totalorder %s364, %s367
      %p373 = scmp.eq.s32.totalorder %s24, 0
      %p374 = por %p372, %p373
      %p375 = scmp.ne.s32.totalorder %s364, %s367
      %p376 = scmp.eq.s32.totalorder %s29, 1
      %p377 = por %p375, %p376
      %p378 = scmp.ne.s32.totalorder %s367, %s368
      %p379 = scmp.eq.s32.totalorder %s29, 0
      %p380 = por %p378, %p379
      %p381 = scmp.ne.s32.totalorder %s367, %s368
      %p382 = scmp.eq.s32.totalorder %s30, 1
      %p383 = por %p381, %p382
      %p385 = scmp.ne.s32.totalorder %s368, %s384
      %p386 = scmp.eq.s32.totalorder %s30, 0
      %p387 = por %p385, %p386
      %p388 = scmp.le.s32.totalorder 1, %s24
      %p389 = scmp.lt.s32.totalorder %s24, 3
      %p390 = pnand %p388, %p389
      %p391 = pneg %p390
      // Predicated region
      $region9: #{tpu_custom_call.1} parent=5 // pred_check
        _
      $region10: #{tpu_custom_call.1} parent=5 // pred_check_branch
        %393 = sbr.rel (%p390) target = $region12
      $region11: #{tpu_custom_call.1} parent=5 // pred_region
        %s394 = ssub.s32 %s24, 1
        // Predicated region
        $region13: #{tpu_custom_call.1} parent=11 // pred_check
          %p395 = pneg %p123
        $region14: #{tpu_custom_call.1} parent=11 // pred_check_branch
          %397 = sbr.rel (%p395) target = $region16
        $region15: #{tpu_custom_call.1} parent=11 // pred_region
          _
        $region16: #{tpu_custom_call.1} parent=11 // pred_fallthru
          _
        // Predicated region
        $region17: #{tpu_custom_call.1} parent=11 // pred_check
          %p398 = pneg %p144
        $region18: #{tpu_custom_call.1} parent=11 // pred_check_branch
          %400 = sbr.rel (%p398) target = $region20
        $region19: #{tpu_custom_call.1} parent=11 // pred_region
          _
        $region20: #{tpu_custom_call.1} parent=11 // pred_fallthru
          _
        // Predicated region
        $region21: #{tpu_custom_call.1} parent=11 // pred_check
          %p401 = pneg %p165
        $region22: #{tpu_custom_call.1} parent=11 // pred_check_branch
          %403 = sbr.rel (%p401) target = $region24
        $region23: #{tpu_custom_call.1} parent=11 // pred_region
          _
        $region24: #{tpu_custom_call.1} parent=11 // pred_fallthru
          _
        // Predicated region
        $region25: #{tpu_custom_call.1} parent=11 // pred_check
          %p404 = pneg %p186
        $region26: #{tpu_custom_call.1} parent=11 // pred_check_branch
          %406 = sbr.rel (%p404) target = $region28
        $region27: #{tpu_custom_call.1} parent=11 // pred_region
          _
        $region28: #{tpu_custom_call.1} parent=11 // pred_fallthru
          _
        // Predicated region
        $region29: #{tpu_custom_call.1} parent=11 // pred_check
          %p407 = pneg %p207
        $region30: #{tpu_custom_call.1} parent=11 // pred_check_branch
          %409 = sbr.rel (%p407) target = $region32
        $region31: #{tpu_custom_call.1} parent=11 // pred_region
          _
        $region32: #{tpu_custom_call.1} parent=11 // pred_fallthru
          _
        // Predicated region
        $region33: #{tpu_custom_call.1} parent=11 // pred_check
          %p410 = pneg %p228
        $region34: #{tpu_custom_call.1} parent=11 // pred_check_branch
          %412 = sbr.rel (%p410) target = $region36
        $region35: #{tpu_custom_call.1} parent=11 // pred_region
          _
        $region36: #{tpu_custom_call.1} parent=11 // pred_fallthru
          _
        // Predicated region
        $region37: #{tpu_custom_call.1} parent=11 // pred_check
          %p413 = pneg %p249
        $region38: #{tpu_custom_call.1} parent=11 // pred_check_branch
          %415 = sbr.rel (%p413) target = $region40
        $region39: #{tpu_custom_call.1} parent=11 // pred_region
          _
        $region40: #{tpu_custom_call.1} parent=11 // pred_fallthru
          _
        // Predicated region
        $region41: #{tpu_custom_call.1} parent=11 // pred_check
          %p416 = pneg %p270
        $region42: #{tpu_custom_call.1} parent=11 // pred_check_branch
          %418 = sbr.rel (%p416) target = $region44
        $region43: #{tpu_custom_call.1} parent=11 // pred_region
          _
        $region44: #{tpu_custom_call.1} parent=11 // pred_fallthru
          _
        // Predicated region
        $region45: #{tpu_custom_call.1} parent=11 // pred_check
          %p419 = pneg %p291
        $region46: #{tpu_custom_call.1} parent=11 // pred_check_branch
          %421 = sbr.rel (%p419) target = $region48
        $region47: #{tpu_custom_call.1} parent=11 // pred_region
          _
        $region48: #{tpu_custom_call.1} parent=11 // pred_fallthru
          _
        // Predicated region
        $region49: #{tpu_custom_call.1} parent=11 // pred_check
          %p422 = pneg %p312
        $region50: #{tpu_custom_call.1} parent=11 // pred_check_branch
          %424 = sbr.rel (%p422) target = $region52
        $region51: #{tpu_custom_call.1} parent=11 // pred_region
          _
        $region52: #{tpu_custom_call.1} parent=11 // pred_fallthru
          _
        // Predicated region
        $region53: #{tpu_custom_call.1} parent=11 // pred_check
          %p425 = pneg %p333
        $region54: #{tpu_custom_call.1} parent=11 // pred_check_branch
          %427 = sbr.rel (%p425) target = $region56
        $region55: #{tpu_custom_call.1} parent=11 // pred_region
          _
        $region56: #{tpu_custom_call.1} parent=11 // pred_fallthru
          _
        // Predicated region
        $region57: #{tpu_custom_call.1} parent=11 // pred_check
          %p428 = pneg %p354
        $region58: #{tpu_custom_call.1} parent=11 // pred_check_branch
          %430 = sbr.rel (%p428) target = $region60
        $region59: #{tpu_custom_call.1} parent=11 // pred_region
          _
        $region60: #{tpu_custom_call.1} parent=11 // pred_fallthru
          _
      $region12: #{tpu_custom_call.1} parent=5 // pred_fallthru
        _
      %p431 = scmp.lt.s32.totalorder %s24, 2
      // Predicated region
      $region61: #{tpu_custom_call.1} parent=5 // pred_check
        %p432 = pneg %p431
      $region62: #{tpu_custom_call.1} parent=5 // pred_check_branch
        %434 = sbr.rel (%p432) target = $region64
      $region63: #{tpu_custom_call.1} parent=5 // pred_region
        // Predicated region
        $region65: #{tpu_custom_call.1} parent=63 // pred_check
          %p435 = pneg %p44
        $region66: #{tpu_custom_call.1} parent=63 // pred_check_branch
          %437 = sbr.rel (%p435) target = $region68
        $region67: #{tpu_custom_call.1} parent=63 // pred_region
          %p438 = scmp.lt.s32.totalorder %s24, 1
          %s439 = scalar_select %p438, %s24, 1
          %s440 = smul.addr %s439, 16
          %s441 = smul.addr %s440, 4
          %s442 = scalar_lea.vmem %s0, %s441
        $region68: #{tpu_custom_call.1} parent=63 // pred_fallthru
          _
        // Predicated region
        $region69: #{tpu_custom_call.1} parent=63 // pred_check
          %p443 = pneg %p70
        $region70: #{tpu_custom_call.1} parent=63 // pred_check_branch
          %445 = sbr.rel (%p443) target = $region72
        $region71: #{tpu_custom_call.1} parent=63 // pred_region
          %p446 = scmp.lt.s32.totalorder %s24, 1
          %s447 = scalar_select %p446, %s24, 1
          %s448 = smul.addr %s447, 16
          %s449 = smul.addr %s448, 8
          %s450 = scalar_lea.vmem %s1, %s449
        $region72: #{tpu_custom_call.1} parent=63 // pred_fallthru
          _
        // Predicated region
        $region73: #{tpu_custom_call.1} parent=63 // pred_check
          %p451 = pneg %p96
        $region74: #{tpu_custom_call.1} parent=63 // pred_check_branch
          %453 = sbr.rel (%p451) target = $region76
        $region75: #{tpu_custom_call.1} parent=63 // pred_region
          %p454 = scmp.lt.s32.totalorder %s24, 1
          %s455 = scalar_select %p454, %s24, 1
          %s456 = smul.addr %s455, 16
          %s457 = smul.addr %s456, 8
          %s458 = scalar_lea.vmem %s2, %s457
        $region76: #{tpu_custom_call.1} parent=63 // pred_fallthru
          _
      $region64: #{tpu_custom_call.1} parent=5 // pred_fallthru
        _
      %p459 = scmp.le.s32.totalorder 1, %s24
      %p460 = scmp.lt.s32.totalorder %s24, 3
      %p461 = pnand %p459, %p460
      %p462 = pneg %p461
      // Predicated region
      $region77: #{tpu_custom_call.1} parent=5 // pred_check
        _
      $region78: #{tpu_custom_call.1} parent=5 // pred_check_branch
        %464 = sbr.rel (%p461) target = $region80
      $region79: #{tpu_custom_call.1} parent=5 // pred_region
        %s465 = ssub.s32 %s24, 1
        %p466 = scmp.lt.s32.totalorder %s29, 1
        %s467 = scalar_select %p466, %s29, 1
        %s468 = smul.addr %s467, 16
        %s469 = smul.addr %s468, 4
        %s470 = scalar_lea.vmem %s0, %s469
        %p471 = pneg %p50
        %p472 = pneg %p47
        %p473 = scmp.lt.s32.totalorder %s29, 1
        %s474 = scalar_select %p473, %s29, 1
        %s475 = smul.addr %s474, 16
        %s476 = smul.addr %s475, 8
        %s477 = scalar_lea.vmem %s1, %s476
        %p478 = pneg %p76
        %p479 = pneg %p73
        %p480 = scmp.lt.s32.totalorder %s29, 1
        %s481 = scalar_select %p480, %s29, 1
        %s482 = smul.addr %s481, 16
        %s483 = smul.addr %s482, 8
        %s484 = scalar_lea.vmem %s2, %s483
        %p485 = pneg %p102
        %p486 = pneg %p99
        %p487 = pneg %p123
        %p488 = pneg %p120
        %p489 = pneg %p144
        %p490 = pneg %p141
        %p491 = pneg %p165
        %p492 = pneg %p162
        %p493 = pneg %p186
        %p494 = pneg %p183
        %p495 = pneg %p207
        %p496 = pneg %p204
        %p497 = pneg %p228
        %p498 = pneg %p225
        %p499 = pneg %p249
        %p500 = pneg %p246
        %p501 = pneg %p270
        %p502 = pneg %p267
        %p503 = pneg %p291
        %p504 = pneg %p288
        %p505 = pneg %p312
        %p506 = pneg %p309
        %p507 = pneg %p333
        %p508 = pneg %p330
        %p509 = pneg %p354
        %p510 = pneg %p351
        %p511 = pneg %p380
        %p512 = pneg %p377
        %s513 = sand.u32 %s367, 1
        %s514 = scalar_lea.sflag [#allocation3], %s513
        %s515 = sand.u32 %s367, 1
        %s516 = smul.addr %s515, 8
        %s517 = scalar_lea.vmem [#allocation2], %s516
        %p518 = scmp.lt.s32.totalorder %s29, 1
        %s519 = scalar_select %p518, %s29, 1
        %s520 = smul.addr %s519, 16
        %s521 = smul.addr %s520, 4
        %s522 = scalar_lea.vmem %s0, %s521
        %p523 = scmp.lt.s32.totalorder %s29, 1
        %s524 = scalar_select %p523, %s29, 1
        %s525 = smul.addr %s524, 16
        %s526 = smul.addr %s525, 8
        %s527 = scalar_lea.vmem %s1, %s526
        %p528 = scmp.lt.s32.totalorder %s29, 1
        %s529 = scalar_select %p528, %s29, 1
        %s530 = smul.addr %s529, 16
        %s531 = smul.addr %s530, 8
        %s532 = scalar_lea.vmem %s2, %s531
        %v534 = vld [vmem:[%s522] sm:$0xf]
        %v535 = vld [vmem:[%s522 + $0x4] sm:$0xf]
        %v536 = vld [vmem:[%s522 + $0x8] sm:$0xf]
        %v537 = vld [vmem:[%s522 + $0xc] sm:$0xf]
        %v538 = vld [vmem:[%s522 + $0x10] sm:$0xf]
        %v539 = vld [vmem:[%s522 + $0x14] sm:$0xf]
        %v540 = vld [vmem:[%s522 + $0x18] sm:$0xf]
        %v541 = vld [vmem:[%s522 + $0x1c] sm:$0xf]
        %v542 = vld [vmem:[%s522 + $0x20] sm:$0xf]
        %v543 = vld [vmem:[%s522 + $0x24] sm:$0xf]
        %v544 = vld [vmem:[%s522 + $0x28] sm:$0xf]
        %v545 = vld [vmem:[%s522 + $0x2c] sm:$0xf]
        %v546 = vld [vmem:[%s522 + $0x30] sm:$0xf]
        %v547 = vld [vmem:[%s522 + $0x34] sm:$0xf]
        %v548 = vld [vmem:[%s522 + $0x38] sm:$0xf]
        %v549 = vld [vmem:[%s522 + $0x3c] sm:$0xf]
        %v550 = vld [vmem:[%s532] sm:$0xff]
        %v551 = vld [vmem:[%s532 + $0x8] sm:$0xff]
        %v552 = vld [vmem:[%s532 + $0x10] sm:$0xff]
        %v553 = vld [vmem:[%s532 + $0x18] sm:$0xff]
        %v554 = vld [vmem:[%s532 + $0x20] sm:$0xff]
        %v555 = vld [vmem:[%s532 + $0x28] sm:$0xff]
        %v556 = vld [vmem:[%s532 + $0x30] sm:$0xff]
        %v557 = vld [vmem:[%s532 + $0x38] sm:$0xff]
        %v558 = vld [vmem:[%s532 + $0x40] sm:$0xff]
        %v559 = vld [vmem:[%s532 + $0x48] sm:$0xff]
        %v560 = vld [vmem:[%s532 + $0x50] sm:$0xff]
        %v561 = vld [vmem:[%s532 + $0x58] sm:$0xff]
        %v562 = vld [vmem:[%s532 + $0x60] sm:$0xff]
        %v563 = vld [vmem:[%s532 + $0x68] sm:$0xff]
        %v564 = vld [vmem:[%s532 + $0x70] sm:$0xff]
        %v565 = vld [vmem:[%s532 + $0x78] sm:$0xff]
        %v566 = vld [vmem:[%s3] sm:$0x1]
        %568 = vset.pattern.permute.xlu0 0
        %569 = vperm.xlu0 %568, %v550
        %v570 = vpop.permute.xlu0 %569
        %573 = vset.pattern.permute.xlu0 0
        %574 = vperm.xlu0 %573, %v551
        %v575 = vpop.permute.xlu0 %574
        %578 = vset.pattern.permute.xlu0 0
        %579 = vperm.xlu0 %578, %v552
        %v580 = vpop.permute.xlu0 %579
        %583 = vset.pattern.permute.xlu0 0
        %584 = vperm.xlu0 %583, %v553
        %v585 = vpop.permute.xlu0 %584
        %588 = vset.pattern.permute.xlu0 0
        %589 = vperm.xlu0 %588, %v554
        %v590 = vpop.permute.xlu0 %589
        %593 = vset.pattern.permute.xlu0 0
        %594 = vperm.xlu0 %593, %v555
        %v595 = vpop.permute.xlu0 %594
        %598 = vset.pattern.permute.xlu0 0
        %599 = vperm.xlu0 %598, %v556
        %v600 = vpop.permute.xlu0 %599
        %603 = vset.pattern.permute.xlu0 0
        %604 = vperm.xlu0 %603, %v557
        %v605 = vpop.permute.xlu0 %604
        %608 = vset.pattern.permute.xlu0 0
        %609 = vperm.xlu0 %608, %v558
        %v610 = vpop.permute.xlu0 %609
        %613 = vset.pattern.permute.xlu0 0
        %614 = vperm.xlu0 %613, %v559
        %v615 = vpop.permute.xlu0 %614
        %618 = vset.pattern.permute.xlu0 0
        %619 = vperm.xlu0 %618, %v560
        %v620 = vpop.permute.xlu0 %619
        %623 = vset.pattern.permute.xlu0 0
        %624 = vperm.xlu0 %623, %v561
        %v625 = vpop.permute.xlu0 %624
        %628 = vset.pattern.permute.xlu0 0
        %629 = vperm.xlu0 %628, %v562
        %v630 = vpop.permute.xlu0 %629
        %633 = vset.pattern.permute.xlu0 0
        %634 = vperm.xlu0 %633, %v563
        %v635 = vpop.permute.xlu0 %634
        %638 = vset.pattern.permute.xlu0 0
        %639 = vperm.xlu0 %638, %v564
        %v640 = vpop.permute.xlu0 %639
        %643 = vset.pattern.permute.xlu0 0
        %644 = vperm.xlu0 %643, %v565
        %v645 = vpop.permute.xlu0 %644
        %v648 = vlaneseq
        %v649 = vshrl.u32 %v648, 7
        %v650 = vsub.s32 0, %v649
        %v651 = vrot.slane %v566, %v650
        %v653 = vmul.f32 %v570, %v651
        %v654 = vmul.f32 %v575, %v651
        %v655 = vmul.f32 %v580, %v651
        %v656 = vmul.f32 %v585, %v651
        %v657 = vmul.f32 %v590, %v651
        %v658 = vmul.f32 %v595, %v651
        %v659 = vmul.f32 %v600, %v651
        %v660 = vmul.f32 %v605, %v651
        %v661 = vmul.f32 %v610, %v651
        %v662 = vmul.f32 %v615, %v651
        %v663 = vmul.f32 %v620, %v651
        %v664 = vmul.f32 %v625, %v651
        %v665 = vmul.f32 %v630, %v651
        %v666 = vmul.f32 %v635, %v651
        %v667 = vmul.f32 %v640, %v651
        %v668 = vmul.f32 %v645, %v651
        %v669 = vpack.c.bf16 %v654, %v653
        %v670 = vpack.c.bf16 %v656, %v655
        %v671 = vpack.c.bf16 %v658, %v657
        %v672 = vpack.c.bf16 %v660, %v659
        %v673 = vpack.c.bf16 %v662, %v661
        %v674 = vpack.c.bf16 %v664, %v663
        %v675 = vpack.c.bf16 %v666, %v665
        %v676 = vpack.c.bf16 %v668, %v667
        %v677 = vld [vmem:[%s4] sm:$0x1]
        %v679 = vlaneseq
        %v680 = vshrl.u32 %v679, 7
        %v681 = vsub.s32 0, %v680
        %v682 = vrot.slane %v677, %v681
        %v700 = vunpack.c.l.b16 %v534
        %v701 = vunpack.c.l.b16 %v535
        %v702 = vunpack.c.l.b16 %v536
        %v703 = vunpack.c.l.b16 %v537
        %v704 = vunpack.c.l.b16 %v538
        %v705 = vunpack.c.l.b16 %v539
        %v706 = vunpack.c.l.b16 %v540
        %v707 = vunpack.c.l.b16 %v541
        %v708 = vunpack.c.l.b16 %v542
        %v709 = vunpack.c.l.b16 %v543
        %v710 = vunpack.c.l.b16 %v544
        %v711 = vunpack.c.l.b16 %v545
        %v712 = vunpack.c.l.b16 %v546
        %v713 = vunpack.c.l.b16 %v547
        %v714 = vunpack.c.l.b16 %v548
        %v715 = vunpack.c.l.b16 %v549
        %v716 = vpack.c.b16 %v701, %v700
        %v717 = vpack.c.b16 %v703, %v702
        %v718 = vpack.c.b16 %v705, %v704
        %v719 = vpack.c.b16 %v707, %v706
        %v720 = vpack.c.b16 %v709, %v708
        %v721 = vpack.c.b16 %v711, %v710
        %v722 = vpack.c.b16 %v713, %v712
        %v723 = vpack.c.b16 %v715, %v714
        %732 = vmatprep.subr.bf16.mxu0 0
        %733 = vmatpush1.bf16.msra.mxu0 %v676
        %734 = vmatprep.subr.bf16.mxu0 0
        %735 = vmatpush1.bf16.msra.mxu0 %v675
        %736 = vmatprep.subr.bf16.mxu0 0
        %737 = vmatpush1.bf16.msra.mxu0 %v674
        %738 = vmatprep.subr.bf16.mxu0 0
        %739 = vmatpush1.bf16.msra.mxu0 %v673
        %740 = vmatprep.subr.bf16.mxu0 0
        %741 = vmatpush1.bf16.msra.mxu0 %v672
        %742 = vmatprep.subr.bf16.mxu0 0
        %743 = vmatpush1.bf16.msra.mxu0 %v671
        %744 = vmatprep.subr.bf16.mxu0 0
        %745 = vmatpush1.bf16.msra.mxu0 %v670
        %746 = vmatprep.subr.bf16.mxu0 0
        %747 = vmatpush1.bf16.msra.mxu0 %v669
        %748 = vmatprep.subr.bf16.mxu0 0
        %749 = vmatpush2.bf16.msra.mxu0 0
        %750 = vmatprep.subr.bf16.mxu0 0
        %751 = vmatpush2.bf16.msra.mxu0 0
        %752 = vmatprep.subr.bf16.mxu0 0
        %753 = vmatpush2.bf16.msra.mxu0 0
        %754 = vmatprep.subr.bf16.mxu0 0
        %755 = vmatpush2.bf16.msra.mxu0 0
        %756 = vmatprep.subr.bf16.mxu0 0
        %757 = vmatpush2.bf16.msra.mxu0 0
        %758 = vmatprep.subr.bf16.mxu0 0
        %759 = vmatpush2.bf16.msra.mxu0 0
        %760 = vmatprep.subr.bf16.mxu0 0
        %761 = vmatpush2.bf16.msra.mxu0 0
        %762 = vmatprep.subr.bf16.mxu0 0
        %763 = vmatpush2.bf16.msra.mxu0 0
        %764 = vmatprep.mubr.bf16.mxu0 0
        %765 = vmatmul.mubr.bf16.gmra.mxu0 %v716
        %v766 = vpop.f32.mrf.mxu0
        %v767 = vadd.f32 %v682, %v766
        %v768 = vpop.f32.mrf.mxu0
        %v769 = vpop.f32.mrf.mxu0
        %v770 = vadd.f32 %v682, %v769
        %v771 = vpop.f32.mrf.mxu0
        %772 = vmatprep.mubr.bf16.mxu0 0
        %773 = vmatmul.mubr.bf16.gmra.mxu0 %v717
        %v774 = vpop.f32.mrf.mxu0
        %v775 = vadd.f32 %v682, %v774
        %v776 = vpop.f32.mrf.mxu0
        %v777 = vpop.f32.mrf.mxu0
        %v778 = vadd.f32 %v682, %v777
        %v779 = vpop.f32.mrf.mxu0
        %780 = vmatprep.mubr.bf16.mxu0 0
        %781 = vmatmul.mubr.bf16.gmra.mxu0 %v718
        %v782 = vpop.f32.mrf.mxu0
        %v783 = vadd.f32 %v682, %v782
        %v784 = vpop.f32.mrf.mxu0
        %v785 = vpop.f32.mrf.mxu0
        %v786 = vadd.f32 %v682, %v785
        %v787 = vpop.f32.mrf.mxu0
        %788 = vmatprep.mubr.bf16.mxu0 0
        %789 = vmatmul.mubr.bf16.gmra.mxu0 %v719
        %v790 = vpop.f32.mrf.mxu0
        %v791 = vadd.f32 %v682, %v790
        %v792 = vpop.f32.mrf.mxu0
        %v793 = vpop.f32.mrf.mxu0
        %v794 = vadd.f32 %v682, %v793
        %v795 = vpop.f32.mrf.mxu0
        %796 = vmatprep.mubr.bf16.mxu0 0
        %797 = vmatmul.mubr.bf16.gmra.mxu0 %v720
        %v798 = vpop.f32.mrf.mxu0
        %v799 = vadd.f32 %v682, %v798
        %v800 = vpop.f32.mrf.mxu0
        %v801 = vpop.f32.mrf.mxu0
        %v802 = vadd.f32 %v682, %v801
        %v803 = vpop.f32.mrf.mxu0
        %804 = vmatprep.mubr.bf16.mxu0 0
        %805 = vmatmul.mubr.bf16.gmra.mxu0 %v721
        %v806 = vpop.f32.mrf.mxu0
        %v807 = vadd.f32 %v682, %v806
        %v808 = vpop.f32.mrf.mxu0
        %v809 = vpop.f32.mrf.mxu0
        %v810 = vadd.f32 %v682, %v809
        %v811 = vpop.f32.mrf.mxu0
        %812 = vmatprep.mubr.bf16.mxu0 0
        %813 = vmatmul.mubr.bf16.gmra.mxu0 %v722
        %v814 = vpop.f32.mrf.mxu0
        %v815 = vadd.f32 %v682, %v814
        %v816 = vpop.f32.mrf.mxu0
        %v817 = vpop.f32.mrf.mxu0
        %v818 = vadd.f32 %v682, %v817
        %v819 = vpop.f32.mrf.mxu0
        %820 = vmatprep.mubr.bf16.mxu0 0
        %821 = vmatmul.mubr.bf16.gmra.mxu0 %v723
        %v822 = vpop.f32.mrf.mxu0
        %v823 = vadd.f32 %v682, %v822
        %v824 = vpop.f32.mrf.mxu0
        %v825 = vpop.f32.mrf.mxu0
        %v826 = vadd.f32 %v682, %v825
        %v827 = vpop.f32.mrf.mxu0
        %828 = vdwg.mxu0
        %v829 = vmax.f32 %v767, 0.0
        %v830 = vmax.f32 %v770, 0.0
        %v831 = vmax.f32 %v775, 0.0
        %v832 = vmax.f32 %v778, 0.0
        %v833 = vmax.f32 %v783, 0.0
        %v834 = vmax.f32 %v786, 0.0
        %v835 = vmax.f32 %v791, 0.0
        %v836 = vmax.f32 %v794, 0.0
        %v837 = vmax.f32 %v799, 0.0
        %v838 = vmax.f32 %v802, 0.0
        %v839 = vmax.f32 %v807, 0.0
        %v840 = vmax.f32 %v810, 0.0
        %v841 = vmax.f32 %v815, 0.0
        %v842 = vmax.f32 %v818, 0.0
        %v843 = vmax.f32 %v823, 0.0
        %v844 = vmax.f32 %v826, 0.0
        %v845 = vpack.c.bf16 %v830, %v829
        %v846 = vpack.c.bf16 %v832, %v831
        %v847 = vpack.c.bf16 %v834, %v833
        %v848 = vpack.c.bf16 %v836, %v835
        %v849 = vpack.c.bf16 %v838, %v837
        %v850 = vpack.c.bf16 %v840, %v839
        %v851 = vpack.c.bf16 %v842, %v841
        %v852 = vpack.c.bf16 %v844, %v843
        %v853 = vld [vmem:[%s5] sm:$0xf]
        %v854 = vld [vmem:[%s5 + $0x4] sm:$0xf]
        %v855 = vld [vmem:[%s5 + $0x8] sm:$0xf]
        %v856 = vld [vmem:[%s5 + $0xc] sm:$0xf]
        %v861 = vunpack.c.l.b16 %v853
        %v862 = vunpack.c.l.b16 %v854
        %v863 = vunpack.c.l.b16 %v855
        %v864 = vunpack.c.l.b16 %v856
        %v865 = vpack.c.b16 %v862, %v861
        %v866 = vpack.c.b16 %v864, %v863
        %vm869 = vcmask 261120
        %v871 = vsel %vm869, %v845, 0
        %v874 = vsel %vm869, %v846, 0
        %v877 = vsel %vm869, %v847, 0
        %v880 = vsel %vm869, %v848, 0
        %v883 = vsel %vm869, %v849, 0
        %v886 = vsel %vm869, %v850, 0
        %v889 = vsel %vm869, %v851, 0
        %v892 = vsel %vm869, %v852, 0
        %894 = vmatprep.subr.bf16.mxu0 0
        %895 = vmatpush1.bf16.msra.mxu0 0
        %896 = vmatprep.subr.bf16.mxu0 0
        %897 = vmatpush1.bf16.msra.mxu0 0
        %898 = vmatprep.subr.bf16.mxu0 0
        %899 = vmatpush1.bf16.msra.mxu0 0
        %900 = vmatprep.subr.bf16.mxu0 0
        %901 = vmatpush1.bf16.msra.mxu0 0
        %902 = vmatprep.subr.bf16.mxu0 0
        %903 = vmatpush1.bf16.msra.mxu0 0
        %904 = vmatprep.subr.bf16.mxu0 0
        %905 = vmatpush1.bf16.msra.mxu0 0
        %906 = vmatprep.subr.bf16.mxu0 0
        %907 = vmatpush1.bf16.msra.mxu0 %v866
        %908 = vmatprep.subr.bf16.mxu0 0
        %909 = vmatpush1.bf16.msra.mxu0 %v865
        %910 = vmatprep.subr.bf16.mxu0 0
        %911 = vmatpush2.bf16.msra.mxu0 0
        %912 = vmatprep.subr.bf16.mxu0 0
        %913 = vmatpush2.bf16.msra.mxu0 0
        %914 = vmatprep.subr.bf16.mxu0 0
        %915 = vmatpush2.bf16.msra.mxu0 0
        %916 = vmatprep.subr.bf16.mxu0 0
        %917 = vmatpush2.bf16.msra.mxu0 0
        %918 = vmatprep.subr.bf16.mxu0 0
        %919 = vmatpush2.bf16.msra.mxu0 0
        %920 = vmatprep.subr.bf16.mxu0 0
        %921 = vmatpush2.bf16.msra.mxu0 0
        %922 = vmatprep.subr.bf16.mxu0 0
        %923 = vmatpush2.bf16.msra.mxu0 0
        %924 = vmatprep.subr.bf16.mxu0 0
        %925 = vmatpush2.bf16.msra.mxu0 0
        %926 = vmatprep.mubr.bf16.mxu0 0
        %927 = vmatmul.mubr.bf16.gmra.mxu0 %v871
        %v928 = vpop.f32.mrf.mxu0
        %v929 = vadd.f32 0.0, %v928
        %v930 = vpop.f32.mrf.mxu0
        %v931 = vpop.f32.mrf.mxu0
        %v932 = vadd.f32 0.0, %v931
        %v933 = vpop.f32.mrf.mxu0
        %934 = vmatprep.mubr.bf16.mxu0 0
        %935 = vmatmul.mubr.bf16.gmra.mxu0 %v874
        %v936 = vpop.f32.mrf.mxu0
        %v937 = vadd.f32 0.0, %v936
        %v938 = vpop.f32.mrf.mxu0
        %v939 = vpop.f32.mrf.mxu0
        %v940 = vadd.f32 0.0, %v939
        %v941 = vpop.f32.mrf.mxu0
        %942 = vmatprep.mubr.bf16.mxu0 0
        %943 = vmatmul.mubr.bf16.gmra.mxu0 %v877
        %v944 = vpop.f32.mrf.mxu0
        %v945 = vadd.f32 0.0, %v944
        %v946 = vpop.f32.mrf.mxu0
        %v947 = vpop.f32.mrf.mxu0
        %v948 = vadd.f32 0.0, %v947
        %v949 = vpop.f32.mrf.mxu0
        %950 = vmatprep.mubr.bf16.mxu0 0
        %951 = vmatmul.mubr.bf16.gmra.mxu0 %v880
        %v952 = vpop.f32.mrf.mxu0
        %v953 = vadd.f32 0.0, %v952
        %v954 = vpop.f32.mrf.mxu0
        %v955 = vpop.f32.mrf.mxu0
        %v956 = vadd.f32 0.0, %v955
        %v957 = vpop.f32.mrf.mxu0
        %958 = vmatprep.mubr.bf16.mxu0 0
        %959 = vmatmul.mubr.bf16.gmra.mxu0 %v883
        %v960 = vpop.f32.mrf.mxu0
        %v961 = vadd.f32 0.0, %v960
        %v962 = vpop.f32.mrf.mxu0
        %v963 = vpop.f32.mrf.mxu0
        %v964 = vadd.f32 0.0, %v963
        %v965 = vpop.f32.mrf.mxu0
        %966 = vmatprep.mubr.bf16.mxu0 0
        %967 = vmatmul.mubr.bf16.gmra.mxu0 %v886
        %v968 = vpop.f32.mrf.mxu0
        %v969 = vadd.f32 0.0, %v968
        %v970 = vpop.f32.mrf.mxu0
        %v971 = vpop.f32.mrf.mxu0
        %v972 = vadd.f32 0.0, %v971
        %v973 = vpop.f32.mrf.mxu0
        %974 = vmatprep.mubr.bf16.mxu0 0
        %975 = vmatmul.mubr.bf16.gmra.mxu0 %v889
        %v976 = vpop.f32.mrf.mxu0
        %v977 = vadd.f32 0.0, %v976
        %v978 = vpop.f32.mrf.mxu0
        %v979 = vpop.f32.mrf.mxu0
        %v980 = vadd.f32 0.0, %v979
        %v981 = vpop.f32.mrf.mxu0
        %982 = vmatprep.mubr.bf16.mxu0 0
        %983 = vmatmul.mubr.bf16.gmra.mxu0 %v892
        %v984 = vpop.f32.mrf.mxu0
        %v985 = vadd.f32 0.0, %v984
        %v986 = vpop.f32.mrf.mxu0
        %v987 = vpop.f32.mrf.mxu0
        %v988 = vadd.f32 0.0, %v987
        %v989 = vpop.f32.mrf.mxu0
        %990 = vdwg.mxu0
        %v991 = vpack.c.bf16 %v932, %v929
        %v992 = vpack.c.bf16 %v940, %v937
        %v993 = vpack.c.bf16 %v948, %v945
        %v994 = vpack.c.bf16 %v956, %v953
        %v995 = vpack.c.bf16 %v964, %v961
        %v996 = vpack.c.bf16 %v972, %v969
        %v997 = vpack.c.bf16 %v980, %v977
        %v998 = vpack.c.bf16 %v988, %v985
        %v999 = vld [vmem:[%s6] sm:$0x1]
        %v1001 = vlaneseq
        %v1002 = vshrl.u32 %v1001, 7
        %v1003 = vsub.s32 0, %v1002
        %v1004 = vrot.slane %v999, %v1003
        %1006 = vmatprep.subr.bf16.mxu0 0
        %1007 = vmatpush1.bf16.msra.mxu0 %v998
        %1008 = vmatprep.subr.bf16.mxu0 0
        %1009 = vmatpush1.bf16.msra.mxu0 %v997
        %1010 = vmatprep.subr.bf16.mxu0 0
        %1011 = vmatpush1.bf16.msra.mxu0 %v996
        %1012 = vmatprep.subr.bf16.mxu0 0
        %1013 = vmatpush1.bf16.msra.mxu0 %v995
        %1014 = vmatprep.subr.bf16.mxu0 0
        %1015 = vmatpush1.bf16.msra.mxu0 %v994
        %1016 = vmatprep.subr.bf16.mxu0 0
        %1017 = vmatpush1.bf16.msra.mxu0 %v993
        %1018 = vmatprep.subr.bf16.mxu0 0
        %1019 = vmatpush1.bf16.msra.mxu0 %v992
        %1020 = vmatprep.subr.bf16.mxu0 0
        %1021 = vmatpush1.bf16.msra.mxu0 %v991
        %1022 = vmatprep.subr.bf16.mxu0 0
        %1023 = vmatpush2.bf16.msra.mxu0 0
        %1024 = vmatprep.subr.bf16.mxu0 0
        %1025 = vmatpush2.bf16.msra.mxu0 0
        %1026 = vmatprep.subr.bf16.mxu0 0
        %1027 = vmatpush2.bf16.msra.mxu0 0
        %1028 = vmatprep.subr.bf16.mxu0 0
        %1029 = vmatpush2.bf16.msra.mxu0 0
        %1030 = vmatprep.subr.bf16.mxu0 0
        %1031 = vmatpush2.bf16.msra.mxu0 0
        %1032 = vmatprep.subr.bf16.mxu0 0
        %1033 = vmatpush2.bf16.msra.mxu0 0
        %1034 = vmatprep.subr.bf16.mxu0 0
        %1035 = vmatpush2.bf16.msra.mxu0 0
        %1036 = vmatprep.subr.bf16.mxu0 0
        %1037 = vmatpush2.bf16.msra.mxu0 0
        %1038 = vmatprep.mubr.bf16.mxu0 0
        %1039 = vmatmul.mubr.bf16.gmra.mxu0 %v716
        %v1040 = vpop.f32.mrf.mxu0
        %v1041 = vadd.f32 %v1004, %v1040
        %v1042 = vpop.f32.mrf.mxu0
        %v1043 = vpop.f32.mrf.mxu0
        %v1044 = vadd.f32 %v1004, %v1043
        %v1045 = vpop.f32.mrf.mxu0
        %1046 = vmatprep.mubr.bf16.mxu0 0
        %1047 = vmatmul.mubr.bf16.gmra.mxu0 %v717
        %v1048 = vpop.f32.mrf.mxu0
        %v1049 = vadd.f32 %v1004, %v1048
        %v1050 = vpop.f32.mrf.mxu0
        %v1051 = vpop.f32.mrf.mxu0
        %v1052 = vadd.f32 %v1004, %v1051
        %v1053 = vpop.f32.mrf.mxu0
        %1054 = vmatprep.mubr.bf16.mxu0 0
        %1055 = vmatmul.mubr.bf16.gmra.mxu0 %v718
        %v1056 = vpop.f32.mrf.mxu0
        %v1057 = vadd.f32 %v1004, %v1056
        %v1058 = vpop.f32.mrf.mxu0
        %v1059 = vpop.f32.mrf.mxu0
        %v1060 = vadd.f32 %v1004, %v1059
        %v1061 = vpop.f32.mrf.mxu0
        %1062 = vmatprep.mubr.bf16.mxu0 0
        %1063 = vmatmul.mubr.bf16.gmra.mxu0 %v719
        %v1064 = vpop.f32.mrf.mxu0
        %v1065 = vadd.f32 %v1004, %v1064
        %v1066 = vpop.f32.mrf.mxu0
        %v1067 = vpop.f32.mrf.mxu0
        %v1068 = vadd.f32 %v1004, %v1067
        %v1069 = vpop.f32.mrf.mxu0
        %1070 = vmatprep.mubr.bf16.mxu0 0
        %1071 = vmatmul.mubr.bf16.gmra.mxu0 %v720
        %v1072 = vpop.f32.mrf.mxu0
        %v1073 = vadd.f32 %v1004, %v1072
        %v1074 = vpop.f32.mrf.mxu0
        %v1075 = vpop.f32.mrf.mxu0
        %v1076 = vadd.f32 %v1004, %v1075
        %v1077 = vpop.f32.mrf.mxu0
        %1078 = vmatprep.mubr.bf16.mxu0 0
        %1079 = vmatmul.mubr.bf16.gmra.mxu0 %v721
        %v1080 = vpop.f32.mrf.mxu0
        %v1081 = vadd.f32 %v1004, %v1080
        %v1082 = vpop.f32.mrf.mxu0
        %v1083 = vpop.f32.mrf.mxu0
        %v1084 = vadd.f32 %v1004, %v1083
        %v1085 = vpop.f32.mrf.mxu0
        %1086 = vmatprep.mubr.bf16.mxu0 0
        %1087 = vmatmul.mubr.bf16.gmra.mxu0 %v722
        %v1088 = vpop.f32.mrf.mxu0
        %v1089 = vadd.f32 %v1004, %v1088
        %v1090 = vpop.f32.mrf.mxu0
        %v1091 = vpop.f32.mrf.mxu0
        %v1092 = vadd.f32 %v1004, %v1091
        %v1093 = vpop.f32.mrf.mxu0
        %1094 = vmatprep.mubr.bf16.mxu0 0
        %1095 = vmatmul.mubr.bf16.gmra.mxu0 %v723
        %v1096 = vpop.f32.mrf.mxu0
        %v1097 = vadd.f32 %v1004, %v1096
        %v1098 = vpop.f32.mrf.mxu0
        %v1099 = vpop.f32.mrf.mxu0
        %v1100 = vadd.f32 %v1004, %v1099
        %v1101 = vpop.f32.mrf.mxu0
        %1102 = vdwg.mxu0
        %v1103 = vmax.f32 %v1041, 0.0
        %v1104 = vmax.f32 %v1044, 0.0
        %v1105 = vmax.f32 %v1049, 0.0
        %v1106 = vmax.f32 %v1052, 0.0
        %v1107 = vmax.f32 %v1057, 0.0
        %v1108 = vmax.f32 %v1060, 0.0
        %v1109 = vmax.f32 %v1065, 0.0
        %v1110 = vmax.f32 %v1068, 0.0
        %v1111 = vmax.f32 %v1073, 0.0
        %v1112 = vmax.f32 %v1076, 0.0
        %v1113 = vmax.f32 %v1081, 0.0
        %v1114 = vmax.f32 %v1084, 0.0
        %v1115 = vmax.f32 %v1089, 0.0
        %v1116 = vmax.f32 %v1092, 0.0
        %v1117 = vmax.f32 %v1097, 0.0
        %v1118 = vmax.f32 %v1100, 0.0
        %v1119 = vpack.c.bf16 %v1104, %v1103
        %v1120 = vpack.c.bf16 %v1106, %v1105
        %v1121 = vpack.c.bf16 %v1108, %v1107
        %v1122 = vpack.c.bf16 %v1110, %v1109
        %v1123 = vpack.c.bf16 %v1112, %v1111
        %v1124 = vpack.c.bf16 %v1114, %v1113
        %v1125 = vpack.c.bf16 %v1116, %v1115
        %v1126 = vpack.c.bf16 %v1118, %v1117
        %v1127 = vld [vmem:[%s7] sm:$0xf]
        %v1128 = vld [vmem:[%s7 + $0x4] sm:$0xf]
        %v1129 = vld [vmem:[%s7 + $0x8] sm:$0xf]
        %v1130 = vld [vmem:[%s7 + $0xc] sm:$0xf]
        %v1135 = vunpack.c.l.b16 %v1127
        %v1136 = vunpack.c.l.b16 %v1128
        %v1137 = vunpack.c.l.b16 %v1129
        %v1138 = vunpack.c.l.b16 %v1130
        %v1139 = vpack.c.b16 %v1136, %v1135
        %v1140 = vpack.c.b16 %v1138, %v1137
        %v1144 = vsel %vm869, %v1119, 0
        %v1147 = vsel %vm869, %v1120, 0
        %v1150 = vsel %vm869, %v1121, 0
        %v1153 = vsel %vm869, %v1122, 0
        %v1156 = vsel %vm869, %v1123, 0
        %v1159 = vsel %vm869, %v1124, 0
        %v1162 = vsel %vm869, %v1125, 0
        %v1165 = vsel %vm869, %v1126, 0
        %1167 = vmatprep.subr.bf16.mxu0 0
        %1168 = vmatpush1.bf16.msra.mxu0 0
        %1169 = vmatprep.subr.bf16.mxu0 0
        %1170 = vmatpush1.bf16.msra.mxu0 0
        %1171 = vmatprep.subr.bf16.mxu0 0
        %1172 = vmatpush1.bf16.msra.mxu0 0
        %1173 = vmatprep.subr.bf16.mxu0 0
        %1174 = vmatpush1.bf16.msra.mxu0 0
        %1175 = vmatprep.subr.bf16.mxu0 0
        %1176 = vmatpush1.bf16.msra.mxu0 0
        %1177 = vmatprep.subr.bf16.mxu0 0
        %1178 = vmatpush1.bf16.msra.mxu0 0
        %1179 = vmatprep.subr.bf16.mxu0 0
        %1180 = vmatpush1.bf16.msra.mxu0 %v1140
        %1181 = vmatprep.subr.bf16.mxu0 0
        %1182 = vmatpush1.bf16.msra.mxu0 %v1139
        %1183 = vmatprep.subr.bf16.mxu0 0
        %1184 = vmatpush2.bf16.msra.mxu0 0
        %1185 = vmatprep.subr.bf16.mxu0 0
        %1186 = vmatpush2.bf16.msra.mxu0 0
        %1187 = vmatprep.subr.bf16.mxu0 0
        %1188 = vmatpush2.bf16.msra.mxu0 0
        %1189 = vmatprep.subr.bf16.mxu0 0
        %1190 = vmatpush2.bf16.msra.mxu0 0
        %1191 = vmatprep.subr.bf16.mxu0 0
        %1192 = vmatpush2.bf16.msra.mxu0 0
        %1193 = vmatprep.subr.bf16.mxu0 0
        %1194 = vmatpush2.bf16.msra.mxu0 0
        %1195 = vmatprep.subr.bf16.mxu0 0
        %1196 = vmatpush2.bf16.msra.mxu0 0
        %1197 = vmatprep.subr.bf16.mxu0 0
        %1198 = vmatpush2.bf16.msra.mxu0 0
        %1199 = vmatprep.mubr.bf16.mxu0 0
        %1200 = vmatmul.mubr.bf16.gmra.mxu0 %v1144
        %v1201 = vpop.f32.mrf.mxu0
        %v1202 = vadd.f32 0.0, %v1201
        %v1203 = vpop.f32.mrf.mxu0
        %v1204 = vpop.f32.mrf.mxu0
        %v1205 = vadd.f32 0.0, %v1204
        %v1206 = vpop.f32.mrf.mxu0
        %1207 = vmatprep.mubr.bf16.mxu0 0
        %1208 = vmatmul.mubr.bf16.gmra.mxu0 %v1147
        %v1209 = vpop.f32.mrf.mxu0
        %v1210 = vadd.f32 0.0, %v1209
        %v1211 = vpop.f32.mrf.mxu0
        %v1212 = vpop.f32.mrf.mxu0
        %v1213 = vadd.f32 0.0, %v1212
        %v1214 = vpop.f32.mrf.mxu0
        %1215 = vmatprep.mubr.bf16.mxu0 0
        %1216 = vmatmul.mubr.bf16.gmra.mxu0 %v1150
        %v1217 = vpop.f32.mrf.mxu0
        %v1218 = vadd.f32 0.0, %v1217
        %v1219 = vpop.f32.mrf.mxu0
        %v1220 = vpop.f32.mrf.mxu0
        %v1221 = vadd.f32 0.0, %v1220
        %v1222 = vpop.f32.mrf.mxu0
        %1223 = vmatprep.mubr.bf16.mxu0 0
        %1224 = vmatmul.mubr.bf16.gmra.mxu0 %v1153
        %v1225 = vpop.f32.mrf.mxu0
        %v1226 = vadd.f32 0.0, %v1225
        %v1227 = vpop.f32.mrf.mxu0
        %v1228 = vpop.f32.mrf.mxu0
        %v1229 = vadd.f32 0.0, %v1228
        %v1230 = vpop.f32.mrf.mxu0
        %1231 = vmatprep.mubr.bf16.mxu0 0
        %1232 = vmatmul.mubr.bf16.gmra.mxu0 %v1156
        %v1233 = vpop.f32.mrf.mxu0
        %v1234 = vadd.f32 0.0, %v1233
        %v1235 = vpop.f32.mrf.mxu0
        %v1236 = vpop.f32.mrf.mxu0
        %v1237 = vadd.f32 0.0, %v1236
        %v1238 = vpop.f32.mrf.mxu0
        %1239 = vmatprep.mubr.bf16.mxu0 0
        %1240 = vmatmul.mubr.bf16.gmra.mxu0 %v1159
        %v1241 = vpop.f32.mrf.mxu0
        %v1242 = vadd.f32 0.0, %v1241
        %v1243 = vpop.f32.mrf.mxu0
        %v1244 = vpop.f32.mrf.mxu0
        %v1245 = vadd.f32 0.0, %v1244
        %v1246 = vpop.f32.mrf.mxu0
        %1247 = vmatprep.mubr.bf16.mxu0 0
        %1248 = vmatmul.mubr.bf16.gmra.mxu0 %v1162
        %v1249 = vpop.f32.mrf.mxu0
        %v1250 = vadd.f32 0.0, %v1249
        %v1251 = vpop.f32.mrf.mxu0
        %v1252 = vpop.f32.mrf.mxu0
        %v1253 = vadd.f32 0.0, %v1252
        %v1254 = vpop.f32.mrf.mxu0
        %1255 = vmatprep.mubr.bf16.mxu0 0
        %1256 = vmatmul.mubr.bf16.gmra.mxu0 %v1165
        %v1257 = vpop.f32.mrf.mxu0
        %v1258 = vadd.f32 0.0, %v1257
        %v1259 = vpop.f32.mrf.mxu0
        %v1260 = vpop.f32.mrf.mxu0
        %v1261 = vadd.f32 0.0, %v1260
        %v1262 = vpop.f32.mrf.mxu0
        %1263 = vdwg.mxu0
        %v1264 = vpack.c.bf16 %v1205, %v1202
        %v1265 = vpack.c.bf16 %v1213, %v1210
        %v1266 = vpack.c.bf16 %v1221, %v1218
        %v1267 = vpack.c.bf16 %v1229, %v1226
        %v1268 = vpack.c.bf16 %v1237, %v1234
        %v1269 = vpack.c.bf16 %v1245, %v1242
        %v1270 = vpack.c.bf16 %v1253, %v1250
        %v1271 = vpack.c.bf16 %v1261, %v1258
        %v1272 = vld [vmem:[%s8] sm:$0x1]
        %v1274 = vlaneseq
        %v1275 = vshrl.u32 %v1274, 7
        %v1276 = vsub.s32 0, %v1275
        %v1277 = vrot.slane %v1272, %v1276
        %1279 = vmatprep.subr.bf16.mxu0 0
        %1280 = vmatpush1.bf16.msra.mxu0 %v1271
        %1281 = vmatprep.subr.bf16.mxu0 0
        %1282 = vmatpush1.bf16.msra.mxu0 %v1270
        %1283 = vmatprep.subr.bf16.mxu0 0
        %1284 = vmatpush1.bf16.msra.mxu0 %v1269
        %1285 = vmatprep.subr.bf16.mxu0 0
        %1286 = vmatpush1.bf16.msra.mxu0 %v1268
        %1287 = vmatprep.subr.bf16.mxu0 0
        %1288 = vmatpush1.bf16.msra.mxu0 %v1267
        %1289 = vmatprep.subr.bf16.mxu0 0
        %1290 = vmatpush1.bf16.msra.mxu0 %v1266
        %1291 = vmatprep.subr.bf16.mxu0 0
        %1292 = vmatpush1.bf16.msra.mxu0 %v1265
        %1293 = vmatprep.subr.bf16.mxu0 0
        %1294 = vmatpush1.bf16.msra.mxu0 %v1264
        %1295 = vmatprep.subr.bf16.mxu0 0
        %1296 = vmatpush2.bf16.msra.mxu0 0
        %1297 = vmatprep.subr.bf16.mxu0 0
        %1298 = vmatpush2.bf16.msra.mxu0 0
        %1299 = vmatprep.subr.bf16.mxu0 0
        %1300 = vmatpush2.bf16.msra.mxu0 0
        %1301 = vmatprep.subr.bf16.mxu0 0
        %1302 = vmatpush2.bf16.msra.mxu0 0
        %1303 = vmatprep.subr.bf16.mxu0 0
        %1304 = vmatpush2.bf16.msra.mxu0 0
        %1305 = vmatprep.subr.bf16.mxu0 0
        %1306 = vmatpush2.bf16.msra.mxu0 0
        %1307 = vmatprep.subr.bf16.mxu0 0
        %1308 = vmatpush2.bf16.msra.mxu0 0
        %1309 = vmatprep.subr.bf16.mxu0 0
        %1310 = vmatpush2.bf16.msra.mxu0 0
        %1311 = vmatprep.mubr.bf16.mxu0 0
        %1312 = vmatmul.mubr.bf16.gmra.mxu0 %v716
        %v1313 = vpop.f32.mrf.mxu0
        %v1314 = vadd.f32 %v1277, %v1313
        %v1315 = vpop.f32.mrf.mxu0
        %v1316 = vpop.f32.mrf.mxu0
        %v1317 = vadd.f32 %v1277, %v1316
        %v1318 = vpop.f32.mrf.mxu0
        %1319 = vmatprep.mubr.bf16.mxu0 0
        %1320 = vmatmul.mubr.bf16.gmra.mxu0 %v717
        %v1321 = vpop.f32.mrf.mxu0
        %v1322 = vadd.f32 %v1277, %v1321
        %v1323 = vpop.f32.mrf.mxu0
        %v1324 = vpop.f32.mrf.mxu0
        %v1325 = vadd.f32 %v1277, %v1324
        %v1326 = vpop.f32.mrf.mxu0
        %1327 = vmatprep.mubr.bf16.mxu0 0
        %1328 = vmatmul.mubr.bf16.gmra.mxu0 %v718
        %v1329 = vpop.f32.mrf.mxu0
        %v1330 = vadd.f32 %v1277, %v1329
        %v1331 = vpop.f32.mrf.mxu0
        %v1332 = vpop.f32.mrf.mxu0
        %v1333 = vadd.f32 %v1277, %v1332
        %v1334 = vpop.f32.mrf.mxu0
        %1335 = vmatprep.mubr.bf16.mxu0 0
        %1336 = vmatmul.mubr.bf16.gmra.mxu0 %v719
        %v1337 = vpop.f32.mrf.mxu0
        %v1338 = vadd.f32 %v1277, %v1337
        %v1339 = vpop.f32.mrf.mxu0
        %v1340 = vpop.f32.mrf.mxu0
        %v1341 = vadd.f32 %v1277, %v1340
        %v1342 = vpop.f32.mrf.mxu0
        %1343 = vmatprep.mubr.bf16.mxu0 0
        %1344 = vmatmul.mubr.bf16.gmra.mxu0 %v720
        %v1345 = vpop.f32.mrf.mxu0
        %v1346 = vadd.f32 %v1277, %v1345
        %v1347 = vpop.f32.mrf.mxu0
        %v1348 = vpop.f32.mrf.mxu0
        %v1349 = vadd.f32 %v1277, %v1348
        %v1350 = vpop.f32.mrf.mxu0
        %1351 = vmatprep.mubr.bf16.mxu0 0
        %1352 = vmatmul.mubr.bf16.gmra.mxu0 %v721
        %v1353 = vpop.f32.mrf.mxu0
        %v1354 = vadd.f32 %v1277, %v1353
        %v1355 = vpop.f32.mrf.mxu0
        %v1356 = vpop.f32.mrf.mxu0
        %v1357 = vadd.f32 %v1277, %v1356
        %v1358 = vpop.f32.mrf.mxu0
        %1359 = vmatprep.mubr.bf16.mxu0 0
        %1360 = vmatmul.mubr.bf16.gmra.mxu0 %v722
        %v1361 = vpop.f32.mrf.mxu0
        %v1362 = vadd.f32 %v1277, %v1361
        %v1363 = vpop.f32.mrf.mxu0
        %v1364 = vpop.f32.mrf.mxu0
        %v1365 = vadd.f32 %v1277, %v1364
        %v1366 = vpop.f32.mrf.mxu0
        %1367 = vmatprep.mubr.bf16.mxu0 0
        %1368 = vmatmul.mubr.bf16.gmra.mxu0 %v723
        %v1369 = vpop.f32.mrf.mxu0
        %v1370 = vadd.f32 %v1277, %v1369
        %v1371 = vpop.f32.mrf.mxu0
        %v1372 = vpop.f32.mrf.mxu0
        %v1373 = vadd.f32 %v1277, %v1372
        %v1374 = vpop.f32.mrf.mxu0
        %1375 = vdwg.mxu0
        %v1376 = vmax.f32 %v1314, 0.0
        %v1377 = vmax.f32 %v1317, 0.0
        %v1378 = vmax.f32 %v1322, 0.0
        %v1379 = vmax.f32 %v1325, 0.0
        %v1380 = vmax.f32 %v1330, 0.0
        %v1381 = vmax.f32 %v1333, 0.0
        %v1382 = vmax.f32 %v1338, 0.0
        %v1383 = vmax.f32 %v1341, 0.0
        %v1384 = vmax.f32 %v1346, 0.0
        %v1385 = vmax.f32 %v1349, 0.0
        %v1386 = vmax.f32 %v1354, 0.0
        %v1387 = vmax.f32 %v1357, 0.0
        %v1388 = vmax.f32 %v1362, 0.0
        %v1389 = vmax.f32 %v1365, 0.0
        %v1390 = vmax.f32 %v1370, 0.0
        %v1391 = vmax.f32 %v1373, 0.0
        %v1392 = vpack.c.bf16 %v1377, %v1376
        %v1393 = vpack.c.bf16 %v1379, %v1378
        %v1394 = vpack.c.bf16 %v1381, %v1380
        %v1395 = vpack.c.bf16 %v1383, %v1382
        %v1396 = vpack.c.bf16 %v1385, %v1384
        %v1397 = vpack.c.bf16 %v1387, %v1386
        %v1398 = vpack.c.bf16 %v1389, %v1388
        %v1399 = vpack.c.bf16 %v1391, %v1390
        %v1400 = vld [vmem:[%s9] sm:$0xf]
        %v1401 = vld [vmem:[%s9 + $0x4] sm:$0xf]
        %v1402 = vld [vmem:[%s9 + $0x8] sm:$0xf]
        %v1403 = vld [vmem:[%s9 + $0xc] sm:$0xf]
        %v1408 = vunpack.c.l.b16 %v1400
        %v1409 = vunpack.c.l.b16 %v1401
        %v1410 = vunpack.c.l.b16 %v1402
        %v1411 = vunpack.c.l.b16 %v1403
        %v1412 = vpack.c.b16 %v1409, %v1408
        %v1413 = vpack.c.b16 %v1411, %v1410
        %v1417 = vsel %vm869, %v1392, 0
        %v1420 = vsel %vm869, %v1393, 0
        %v1423 = vsel %vm869, %v1394, 0
        %v1426 = vsel %vm869, %v1395, 0
        %v1429 = vsel %vm869, %v1396, 0
        %v1432 = vsel %vm869, %v1397, 0
        %v1435 = vsel %vm869, %v1398, 0
        %v1438 = vsel %vm869, %v1399, 0
        %1440 = vmatprep.subr.bf16.mxu0 0
        %1441 = vmatpush1.bf16.msra.mxu0 0
        %1442 = vmatprep.subr.bf16.mxu0 0
        %1443 = vmatpush1.bf16.msra.mxu0 0
        %1444 = vmatprep.subr.bf16.mxu0 0
        %1445 = vmatpush1.bf16.msra.mxu0 0
        %1446 = vmatprep.subr.bf16.mxu0 0
        %1447 = vmatpush1.bf16.msra.mxu0 0
        %1448 = vmatprep.subr.bf16.mxu0 0
        %1449 = vmatpush1.bf16.msra.mxu0 0
        %1450 = vmatprep.subr.bf16.mxu0 0
        %1451 = vmatpush1.bf16.msra.mxu0 0
        %1452 = vmatprep.subr.bf16.mxu0 0
        %1453 = vmatpush1.bf16.msra.mxu0 %v1413
        %1454 = vmatprep.subr.bf16.mxu0 0
        %1455 = vmatpush1.bf16.msra.mxu0 %v1412
        %1456 = vmatprep.subr.bf16.mxu0 0
        %1457 = vmatpush2.bf16.msra.mxu0 0
        %1458 = vmatprep.subr.bf16.mxu0 0
        %1459 = vmatpush2.bf16.msra.mxu0 0
        %1460 = vmatprep.subr.bf16.mxu0 0
        %1461 = vmatpush2.bf16.msra.mxu0 0
        %1462 = vmatprep.subr.bf16.mxu0 0
        %1463 = vmatpush2.bf16.msra.mxu0 0
        %1464 = vmatprep.subr.bf16.mxu0 0
        %1465 = vmatpush2.bf16.msra.mxu0 0
        %1466 = vmatprep.subr.bf16.mxu0 0
        %1467 = vmatpush2.bf16.msra.mxu0 0
        %1468 = vmatprep.subr.bf16.mxu0 0
        %1469 = vmatpush2.bf16.msra.mxu0 0
        %1470 = vmatprep.subr.bf16.mxu0 0
        %1471 = vmatpush2.bf16.msra.mxu0 0
        %1472 = vmatprep.mubr.bf16.mxu0 0
        %1473 = vmatmul.mubr.bf16.gmra.mxu0 %v1417
        %v1474 = vpop.f32.mrf.mxu0
        %v1475 = vadd.f32 0.0, %v1474
        %v1476 = vpop.f32.mrf.mxu0
        %v1477 = vpop.f32.mrf.mxu0
        %v1478 = vadd.f32 0.0, %v1477
        %v1479 = vpop.f32.mrf.mxu0
        %1480 = vmatprep.mubr.bf16.mxu0 0
        %1481 = vmatmul.mubr.bf16.gmra.mxu0 %v1420
        %v1482 = vpop.f32.mrf.mxu0
        %v1483 = vadd.f32 0.0, %v1482
        %v1484 = vpop.f32.mrf.mxu0
        %v1485 = vpop.f32.mrf.mxu0
        %v1486 = vadd.f32 0.0, %v1485
        %v1487 = vpop.f32.mrf.mxu0
        %1488 = vmatprep.mubr.bf16.mxu0 0
        %1489 = vmatmul.mubr.bf16.gmra.mxu0 %v1423
        %v1490 = vpop.f32.mrf.mxu0
        %v1491 = vadd.f32 0.0, %v1490
        %v1492 = vpop.f32.mrf.mxu0
        %v1493 = vpop.f32.mrf.mxu0
        %v1494 = vadd.f32 0.0, %v1493
        %v1495 = vpop.f32.mrf.mxu0
        %1496 = vmatprep.mubr.bf16.mxu0 0
        %1497 = vmatmul.mubr.bf16.gmra.mxu0 %v1426
        %v1498 = vpop.f32.mrf.mxu0
        %v1499 = vadd.f32 0.0, %v1498
        %v1500 = vpop.f32.mrf.mxu0
        %v1501 = vpop.f32.mrf.mxu0
        %v1502 = vadd.f32 0.0, %v1501
        %v1503 = vpop.f32.mrf.mxu0
        %1504 = vmatprep.mubr.bf16.mxu0 0
        %1505 = vmatmul.mubr.bf16.gmra.mxu0 %v1429
        %v1506 = vpop.f32.mrf.mxu0
        %v1507 = vadd.f32 0.0, %v1506
        %v1508 = vpop.f32.mrf.mxu0
        %v1509 = vpop.f32.mrf.mxu0
        %v1510 = vadd.f32 0.0, %v1509
        %v1511 = vpop.f32.mrf.mxu0
        %1512 = vmatprep.mubr.bf16.mxu0 0
        %1513 = vmatmul.mubr.bf16.gmra.mxu0 %v1432
        %v1514 = vpop.f32.mrf.mxu0
        %v1515 = vadd.f32 0.0, %v1514
        %v1516 = vpop.f32.mrf.mxu0
        %v1517 = vpop.f32.mrf.mxu0
        %v1518 = vadd.f32 0.0, %v1517
        %v1519 = vpop.f32.mrf.mxu0
        %1520 = vmatprep.mubr.bf16.mxu0 0
        %1521 = vmatmul.mubr.bf16.gmra.mxu0 %v1435
        %v1522 = vpop.f32.mrf.mxu0
        %v1523 = vadd.f32 0.0, %v1522
        %v1524 = vpop.f32.mrf.mxu0
        %v1525 = vpop.f32.mrf.mxu0
        %v1526 = vadd.f32 0.0, %v1525
        %v1527 = vpop.f32.mrf.mxu0
        %1528 = vmatprep.mubr.bf16.mxu0 0
        %1529 = vmatmul.mubr.bf16.gmra.mxu0 %v1438
        %v1530 = vpop.f32.mrf.mxu0
        %v1531 = vadd.f32 0.0, %v1530
        %v1532 = vpop.f32.mrf.mxu0
        %v1533 = vpop.f32.mrf.mxu0
        %v1534 = vadd.f32 0.0, %v1533
        %v1535 = vpop.f32.mrf.mxu0
        %1536 = vdwg.mxu0
        %v1537 = vpack.c.bf16 %v1478, %v1475
        %v1538 = vpack.c.bf16 %v1486, %v1483
        %v1539 = vpack.c.bf16 %v1494, %v1491
        %v1540 = vpack.c.bf16 %v1502, %v1499
        %v1541 = vpack.c.bf16 %v1510, %v1507
        %v1542 = vpack.c.bf16 %v1518, %v1515
        %v1543 = vpack.c.bf16 %v1526, %v1523
        %v1544 = vpack.c.bf16 %v1534, %v1531
        %v1545 = vld [vmem:[%s10] sm:$0x1]
        %v1547 = vlaneseq
        %v1548 = vshrl.u32 %v1547, 7
        %v1549 = vsub.s32 0, %v1548
        %v1550 = vrot.slane %v1545, %v1549
        %1552 = vmatprep.subr.bf16.mxu0 0
        %1553 = vmatpush1.bf16.msra.mxu0 %v1544
        %1554 = vmatprep.subr.bf16.mxu0 0
        %1555 = vmatpush1.bf16.msra.mxu0 %v1543
        %1556 = vmatprep.subr.bf16.mxu0 0
        %1557 = vmatpush1.bf16.msra.mxu0 %v1542
        %1558 = vmatprep.subr.bf16.mxu0 0
        %1559 = vmatpush1.bf16.msra.mxu0 %v1541
        %1560 = vmatprep.subr.bf16.mxu0 0
        %1561 = vmatpush1.bf16.msra.mxu0 %v1540
        %1562 = vmatprep.subr.bf16.mxu0 0
        %1563 = vmatpush1.bf16.msra.mxu0 %v1539
        %1564 = vmatprep.subr.bf16.mxu0 0
        %1565 = vmatpush1.bf16.msra.mxu0 %v1538
        %1566 = vmatprep.subr.bf16.mxu0 0
        %1567 = vmatpush1.bf16.msra.mxu0 %v1537
        %1568 = vmatprep.subr.bf16.mxu0 0
        %1569 = vmatpush2.bf16.msra.mxu0 0
        %1570 = vmatprep.subr.bf16.mxu0 0
        %1571 = vmatpush2.bf16.msra.mxu0 0
        %1572 = vmatprep.subr.bf16.mxu0 0
        %1573 = vmatpush2.bf16.msra.mxu0 0
        %1574 = vmatprep.subr.bf16.mxu0 0
        %1575 = vmatpush2.bf16.msra.mxu0 0
        %1576 = vmatprep.subr.bf16.mxu0 0
        %1577 = vmatpush2.bf16.msra.mxu0 0
        %1578 = vmatprep.subr.bf16.mxu0 0
        %1579 = vmatpush2.bf16.msra.mxu0 0
        %1580 = vmatprep.subr.bf16.mxu0 0
        %1581 = vmatpush2.bf16.msra.mxu0 0
        %1582 = vmatprep.subr.bf16.mxu0 0
        %1583 = vmatpush2.bf16.msra.mxu0 0
        %1584 = vmatprep.mubr.bf16.mxu0 0
        %1585 = vmatmul.mubr.bf16.gmra.mxu0 %v716
        %v1586 = vpop.f32.mrf.mxu0
        %v1587 = vadd.f32 %v1550, %v1586
        %v1588 = vpop.f32.mrf.mxu0
        %v1589 = vpop.f32.mrf.mxu0
        %v1590 = vadd.f32 %v1550, %v1589
        %v1591 = vpop.f32.mrf.mxu0
        %1592 = vmatprep.mubr.bf16.mxu0 0
        %1593 = vmatmul.mubr.bf16.gmra.mxu0 %v717
        %v1594 = vpop.f32.mrf.mxu0
        %v1595 = vadd.f32 %v1550, %v1594
        %v1596 = vpop.f32.mrf.mxu0
        %v1597 = vpop.f32.mrf.mxu0
        %v1598 = vadd.f32 %v1550, %v1597
        %v1599 = vpop.f32.mrf.mxu0
        %1600 = vmatprep.mubr.bf16.mxu0 0
        %1601 = vmatmul.mubr.bf16.gmra.mxu0 %v718
        %v1602 = vpop.f32.mrf.mxu0
        %v1603 = vadd.f32 %v1550, %v1602
        %v1604 = vpop.f32.mrf.mxu0
        %v1605 = vpop.f32.mrf.mxu0
        %v1606 = vadd.f32 %v1550, %v1605
        %v1607 = vpop.f32.mrf.mxu0
        %1608 = vmatprep.mubr.bf16.mxu0 0
        %1609 = vmatmul.mubr.bf16.gmra.mxu0 %v719
        %v1610 = vpop.f32.mrf.mxu0
        %v1611 = vadd.f32 %v1550, %v1610
        %v1612 = vpop.f32.mrf.mxu0
        %v1613 = vpop.f32.mrf.mxu0
        %v1614 = vadd.f32 %v1550, %v1613
        %v1615 = vpop.f32.mrf.mxu0
        %1616 = vmatprep.mubr.bf16.mxu0 0
        %1617 = vmatmul.mubr.bf16.gmra.mxu0 %v720
        %v1618 = vpop.f32.mrf.mxu0
        %v1619 = vadd.f32 %v1550, %v1618
        %v1620 = vpop.f32.mrf.mxu0
        %v1621 = vpop.f32.mrf.mxu0
        %v1622 = vadd.f32 %v1550, %v1621
        %v1623 = vpop.f32.mrf.mxu0
        %1624 = vmatprep.mubr.bf16.mxu0 0
        %1625 = vmatmul.mubr.bf16.gmra.mxu0 %v721
        %v1626 = vpop.f32.mrf.mxu0
        %v1627 = vadd.f32 %v1550, %v1626
        %v1628 = vpop.f32.mrf.mxu0
        %v1629 = vpop.f32.mrf.mxu0
        %v1630 = vadd.f32 %v1550, %v1629
        %v1631 = vpop.f32.mrf.mxu0
        %1632 = vmatprep.mubr.bf16.mxu0 0
        %1633 = vmatmul.mubr.bf16.gmra.mxu0 %v722
        %v1634 = vpop.f32.mrf.mxu0
        %v1635 = vadd.f32 %v1550, %v1634
        %v1636 = vpop.f32.mrf.mxu0
        %v1637 = vpop.f32.mrf.mxu0
        %v1638 = vadd.f32 %v1550, %v1637
        %v1639 = vpop.f32.mrf.mxu0
        %1640 = vmatprep.mubr.bf16.mxu0 0
        %1641 = vmatmul.mubr.bf16.gmra.mxu0 %v723
        %v1642 = vpop.f32.mrf.mxu0
        %v1643 = vadd.f32 %v1550, %v1642
        %v1644 = vpop.f32.mrf.mxu0
        %v1645 = vpop.f32.mrf.mxu0
        %v1646 = vadd.f32 %v1550, %v1645
        %v1647 = vpop.f32.mrf.mxu0
        %1648 = vdwg.mxu0
        %v1649 = vmax.f32 %v1587, 0.0
        %v1650 = vmax.f32 %v1590, 0.0
        %v1651 = vmax.f32 %v1595, 0.0
        %v1652 = vmax.f32 %v1598, 0.0
        %v1653 = vmax.f32 %v1603, 0.0
        %v1654 = vmax.f32 %v1606, 0.0
        %v1655 = vmax.f32 %v1611, 0.0
        %v1656 = vmax.f32 %v1614, 0.0
        %v1657 = vmax.f32 %v1619, 0.0
        %v1658 = vmax.f32 %v1622, 0.0
        %v1659 = vmax.f32 %v1627, 0.0
        %v1660 = vmax.f32 %v1630, 0.0
        %v1661 = vmax.f32 %v1635, 0.0
        %v1662 = vmax.f32 %v1638, 0.0
        %v1663 = vmax.f32 %v1643, 0.0
        %v1664 = vmax.f32 %v1646, 0.0
        %v1665 = vld [vmem:[%s527] sm:$0xff]
        %v1666 = vld [vmem:[%s527 + $0x8] sm:$0xff]
        %v1667 = vld [vmem:[%s527 + $0x10] sm:$0xff]
        %v1668 = vld [vmem:[%s527 + $0x18] sm:$0xff]
        %v1669 = vld [vmem:[%s527 + $0x20] sm:$0xff]
        %v1670 = vld [vmem:[%s527 + $0x28] sm:$0xff]
        %v1671 = vld [vmem:[%s527 + $0x30] sm:$0xff]
        %v1672 = vld [vmem:[%s527 + $0x38] sm:$0xff]
        %v1673 = vld [vmem:[%s527 + $0x40] sm:$0xff]
        %v1674 = vld [vmem:[%s527 + $0x48] sm:$0xff]
        %v1675 = vld [vmem:[%s527 + $0x50] sm:$0xff]
        %v1676 = vld [vmem:[%s527 + $0x58] sm:$0xff]
        %v1677 = vld [vmem:[%s527 + $0x60] sm:$0xff]
        %v1678 = vld [vmem:[%s527 + $0x68] sm:$0xff]
        %v1679 = vld [vmem:[%s527 + $0x70] sm:$0xff]
        %v1680 = vld [vmem:[%s527 + $0x78] sm:$0xff]
        %1682 = vset.pattern.permute.xlu0 0
        %1683 = vperm.xlu0 %1682, %v1665
        %v1684 = vpop.permute.xlu0 %1683
        %1687 = vset.pattern.permute.xlu0 0
        %1688 = vperm.xlu0 %1687, %v1666
        %v1689 = vpop.permute.xlu0 %1688
        %1692 = vset.pattern.permute.xlu0 0
        %1693 = vperm.xlu0 %1692, %v1667
        %v1694 = vpop.permute.xlu0 %1693
        %1697 = vset.pattern.permute.xlu0 0
        %1698 = vperm.xlu0 %1697, %v1668
        %v1699 = vpop.permute.xlu0 %1698
        %1702 = vset.pattern.permute.xlu0 0
        %1703 = vperm.xlu0 %1702, %v1669
        %v1704 = vpop.permute.xlu0 %1703
        %1707 = vset.pattern.permute.xlu0 0
        %1708 = vperm.xlu0 %1707, %v1670
        %v1709 = vpop.permute.xlu0 %1708
        %1712 = vset.pattern.permute.xlu0 0
        %1713 = vperm.xlu0 %1712, %v1671
        %v1714 = vpop.permute.xlu0 %1713
        %1717 = vset.pattern.permute.xlu0 0
        %1718 = vperm.xlu0 %1717, %v1672
        %v1719 = vpop.permute.xlu0 %1718
        %1722 = vset.pattern.permute.xlu0 0
        %1723 = vperm.xlu0 %1722, %v1673
        %v1724 = vpop.permute.xlu0 %1723
        %1727 = vset.pattern.permute.xlu0 0
        %1728 = vperm.xlu0 %1727, %v1674
        %v1729 = vpop.permute.xlu0 %1728
        %1732 = vset.pattern.permute.xlu0 0
        %1733 = vperm.xlu0 %1732, %v1675
        %v1734 = vpop.permute.xlu0 %1733
        %1737 = vset.pattern.permute.xlu0 0
        %1738 = vperm.xlu0 %1737, %v1676
        %v1739 = vpop.permute.xlu0 %1738
        %1742 = vset.pattern.permute.xlu0 0
        %1743 = vperm.xlu0 %1742, %v1677
        %v1744 = vpop.permute.xlu0 %1743
        %1747 = vset.pattern.permute.xlu0 0
        %1748 = vperm.xlu0 %1747, %v1678
        %v1749 = vpop.permute.xlu0 %1748
        %1752 = vset.pattern.permute.xlu0 0
        %1753 = vperm.xlu0 %1752, %v1679
        %v1754 = vpop.permute.xlu0 %1753
        %1757 = vset.pattern.permute.xlu0 0
        %1758 = vperm.xlu0 %1757, %v1680
        %v1759 = vpop.permute.xlu0 %1758
        %v1761 = vmul.f32 %v1649, %v1684
        %v1762 = vmul.f32 %v1650, %v1689
        %v1763 = vmul.f32 %v1651, %v1694
        %v1764 = vmul.f32 %v1652, %v1699
        %v1765 = vmul.f32 %v1653, %v1704
        %v1766 = vmul.f32 %v1654, %v1709
        %v1767 = vmul.f32 %v1655, %v1714
        %v1768 = vmul.f32 %v1656, %v1719
        %v1769 = vmul.f32 %v1657, %v1724
        %v1770 = vmul.f32 %v1658, %v1729
        %v1771 = vmul.f32 %v1659, %v1734
        %v1772 = vmul.f32 %v1660, %v1739
        %v1773 = vmul.f32 %v1661, %v1744
        %v1774 = vmul.f32 %v1662, %v1749
        %v1775 = vmul.f32 %v1663, %v1754
        %v1776 = vmul.f32 %v1664, %v1759
        %v1777 = vsel %vm869, %v1761, 0.0
        %v1778 = vsel %vm869, %v1762, 0.0
        %v1779 = vadd.f32 %v1777, %v1778
        %v1780 = vsel %vm869, %v1763, 0.0
        %v1781 = vadd.f32 %v1779, %v1780
        %v1782 = vsel %vm869, %v1764, 0.0
        %v1783 = vadd.f32 %v1781, %v1782
        %v1784 = vsel %vm869, %v1765, 0.0
        %v1785 = vadd.f32 %v1783, %v1784
        %v1786 = vsel %vm869, %v1766, 0.0
        %v1787 = vadd.f32 %v1785, %v1786
        %v1788 = vsel %vm869, %v1767, 0.0
        %v1789 = vadd.f32 %v1787, %v1788
        %v1790 = vsel %vm869, %v1768, 0.0
        %v1791 = vadd.f32 %v1789, %v1790
        %v1792 = vsel %vm869, %v1769, 0.0
        %v1793 = vadd.f32 %v1791, %v1792
        %v1794 = vsel %vm869, %v1770, 0.0
        %v1795 = vadd.f32 %v1793, %v1794
        %v1796 = vsel %vm869, %v1771, 0.0
        %v1797 = vadd.f32 %v1795, %v1796
        %v1798 = vsel %vm869, %v1772, 0.0
        %v1799 = vadd.f32 %v1797, %v1798
        %v1800 = vsel %vm869, %v1773, 0.0
        %v1801 = vadd.f32 %v1799, %v1800
        %v1802 = vsel %vm869, %v1774, 0.0
        %v1803 = vadd.f32 %v1801, %v1802
        %v1804 = vsel %vm869, %v1775, 0.0
        %v1805 = vadd.f32 %v1803, %v1804
        %v1806 = vsel %vm869, %v1776, 0.0
        %v1807 = vadd.f32 %v1805, %v1806
        %v1808 = vrot.slane %v1807, 4
        %v1809 = vadd.f32 %v1807, %v1808
        %v1810 = vrot.slane %v1809, 2
        %v1811 = vadd.f32 %v1809, %v1810
        %v1812 = vrot.slane %v1811, 1
        %v1813 = vadd.f32 %v1811, %v1812
        %v1814 = vpack.c.bf16 %v1813, %v1813
        %v1815 = vld [vmem:[%s11] sm:$0xf]
        %v1816 = vld [vmem:[%s11 + $0x4] sm:$0xf]
        %v1817 = vld [vmem:[%s11 + $0x8] sm:$0xf]
        %v1818 = vld [vmem:[%s11 + $0xc] sm:$0xf]
        %v1819 = vld [vmem:[%s12] sm:$0x1]
        %v1821 = vlaneseq
        %v1822 = vshrl.u32 %v1821, 7
        %v1823 = vsub.s32 0, %v1822
        %v1824 = vrot.slane %v1819, %v1823
        %v1830 = vunpack.c.l.b16 %v1815
        %v1831 = vunpack.c.l.b16 %v1816
        %v1832 = vunpack.c.l.b16 %v1817
        %v1833 = vunpack.c.l.b16 %v1818
        %v1834 = vpack.c.b16 %v1831, %v1830
        %v1835 = vpack.c.b16 %v1833, %v1832
        %v1839 = vsel %vm869, %v1814, 0
        %1841 = vmatprep.subr.bf16.mxu0 0
        %1842 = vmatpush1.bf16.msra.mxu0 0
        %1843 = vmatprep.subr.bf16.mxu0 0
        %1844 = vmatpush1.bf16.msra.mxu0 0
        %1845 = vmatprep.subr.bf16.mxu0 0
        %1846 = vmatpush1.bf16.msra.mxu0 0
        %1847 = vmatprep.subr.bf16.mxu0 0
        %1848 = vmatpush1.bf16.msra.mxu0 0
        %1849 = vmatprep.subr.bf16.mxu0 0
        %1850 = vmatpush1.bf16.msra.mxu0 0
        %1851 = vmatprep.subr.bf16.mxu0 0
        %1852 = vmatpush1.bf16.msra.mxu0 0
        %1853 = vmatprep.subr.bf16.mxu0 0
        %1854 = vmatpush1.bf16.msra.mxu0 %v1835
        %1855 = vmatprep.subr.bf16.mxu0 0
        %1856 = vmatpush1.bf16.msra.mxu0 %v1834
        %1857 = vmatprep.subr.bf16.mxu0 0
        %1858 = vmatpush2.bf16.msra.mxu0 0
        %1859 = vmatprep.subr.bf16.mxu0 0
        %1860 = vmatpush2.bf16.msra.mxu0 0
        %1861 = vmatprep.subr.bf16.mxu0 0
        %1862 = vmatpush2.bf16.msra.mxu0 0
        %1863 = vmatprep.subr.bf16.mxu0 0
        %1864 = vmatpush2.bf16.msra.mxu0 0
        %1865 = vmatprep.subr.bf16.mxu0 0
        %1866 = vmatpush2.bf16.msra.mxu0 0
        %1867 = vmatprep.subr.bf16.mxu0 0
        %1868 = vmatpush2.bf16.msra.mxu0 0
        %1869 = vmatprep.subr.bf16.mxu0 0
        %1870 = vmatpush2.bf16.msra.mxu0 0
        %1871 = vmatprep.subr.bf16.mxu0 0
        %1872 = vmatpush2.bf16.msra.mxu0 0
        %1873 = vmatprep.mubr.bf16.mxu0 0
        %1874 = vmatmul.mubr.bf16.gmra.mxu0 %v1839
        %v1875 = vpop.f32.mrf.mxu0
        %v1876 = vadd.f32 %v1824, %v1875
        %v1877 = vpop.f32.mrf.mxu0
        %v1878 = vpop.f32.mrf.mxu0
        %v1879 = vpop.f32.mrf.mxu0
        %1880 = vdwg.mxu0
        %v1881 = vmax.f32 %v1876, 0.0
        %v1882 = vpack.c.bf16 %v1881, %v1881
        %v1883 = vld [vmem:[%s13] sm:$0xf]
        %v1884 = vld [vmem:[%s13 + $0x4] sm:$0xf]
        %v1885 = vld [vmem:[%s13 + $0x8] sm:$0xf]
        %v1886 = vld [vmem:[%s13 + $0xc] sm:$0xf]
        %v1887 = vld [vmem:[%s14] sm:$0x1]
        %v1889 = vlaneseq
        %v1890 = vshrl.u32 %v1889, 7
        %v1891 = vsub.s32 0, %v1890
        %v1892 = vrot.slane %v1887, %v1891
        %v1898 = vunpack.c.l.b16 %v1883
        %v1899 = vunpack.c.l.b16 %v1884
        %v1900 = vunpack.c.l.b16 %v1885
        %v1901 = vunpack.c.l.b16 %v1886
        %v1902 = vpack.c.b16 %v1899, %v1898
        %v1903 = vpack.c.b16 %v1901, %v1900
        %v1907 = vsel %vm869, %v1882, 0
        %1909 = vmatprep.subr.bf16.mxu0 0
        %1910 = vmatpush1.bf16.msra.mxu0 0
        %1911 = vmatprep.subr.bf16.mxu0 0
        %1912 = vmatpush1.bf16.msra.mxu0 0
        %1913 = vmatprep.subr.bf16.mxu0 0
        %1914 = vmatpush1.bf16.msra.mxu0 0
        %1915 = vmatprep.subr.bf16.mxu0 0
        %1916 = vmatpush1.bf16.msra.mxu0 0
        %1917 = vmatprep.subr.bf16.mxu0 0
        %1918 = vmatpush1.bf16.msra.mxu0 0
        %1919 = vmatprep.subr.bf16.mxu0 0
        %1920 = vmatpush1.bf16.msra.mxu0 0
        %1921 = vmatprep.subr.bf16.mxu0 0
        %1922 = vmatpush1.bf16.msra.mxu0 %v1903
        %1923 = vmatprep.subr.bf16.mxu0 0
        %1924 = vmatpush1.bf16.msra.mxu0 %v1902
        %1925 = vmatprep.subr.bf16.mxu0 0
        %1926 = vmatpush2.bf16.msra.mxu0 0
        %1927 = vmatprep.subr.bf16.mxu0 0
        %1928 = vmatpush2.bf16.msra.mxu0 0
        %1929 = vmatprep.subr.bf16.mxu0 0
        %1930 = vmatpush2.bf16.msra.mxu0 0
        %1931 = vmatprep.subr.bf16.mxu0 0
        %1932 = vmatpush2.bf16.msra.mxu0 0
        %1933 = vmatprep.subr.bf16.mxu0 0
        %1934 = vmatpush2.bf16.msra.mxu0 0
        %1935 = vmatprep.subr.bf16.mxu0 0
        %1936 = vmatpush2.bf16.msra.mxu0 0
        %1937 = vmatprep.subr.bf16.mxu0 0
        %1938 = vmatpush2.bf16.msra.mxu0 0
        %1939 = vmatprep.subr.bf16.mxu0 0
        %1940 = vmatpush2.bf16.msra.mxu0 0
        %1941 = vmatprep.mubr.bf16.mxu0 0
        %1942 = vmatmul.mubr.bf16.gmra.mxu0 %v1907
        %v1943 = vpop.f32.mrf.mxu0
        %v1944 = vadd.f32 %v1892, %v1943
        %v1945 = vpop.f32.mrf.mxu0
        %v1946 = vpop.f32.mrf.mxu0
        %v1947 = vpop.f32.mrf.mxu0
        %1948 = vdwg.mxu0
        %v1949 = vlaneseq
        %v1950 = vand.u32 %v1949, 127
        %vm1951 = vcmp.lt.s32.totalorder %v1950, 4
        %v1952 = vsel %vm1951, %v1944, -3.4028235e+38
        %1953 = vmax.xlane.f32.xlu0 %v1952
        %v1954 = vpop.xlane.xlu0 %1953
        %v1955 = vsub.f32 %v1952, %v1954
        %v1956 = vmul.f32 %v1955, 1.442695
        %v1957 = vpow.pop %v1956
        %1958 = vadd.xlane.f32.xlu0 %v1957
        %v1959 = vpop.xlane.xlu0 %1958
        %v1960 = vlog2.pop %v1959
        %v1961 = vmul.f32 %v1960, 0.6931472
        %v1962 = vsub.f32 %v1955, %v1961
        %1963 = vst [vmem:[%s517] sm:$0xff] %v1962
        %s1964 = sand.u32 %s367, 1
        %s1965 = scalar_lea.sflag [#allocation3], %s1964
        %s1966 = sand.u32 %s367, 1
        %s1967 = smul.addr %s1966, 8
        %s1968 = scalar_lea.vmem [#allocation2], %s1967
        // Predicated region
        $region81: #{tpu_custom_call.1} parent=79 // pred_check
          %p1969 = pneg %p377
        $region82: #{tpu_custom_call.1} parent=79 // pred_check_branch
          %1971 = sbr.rel (%p1969) target = $region84
        $region83: #{tpu_custom_call.1} parent=79 // pred_region
          %s1973 = ssub.s32 128, 128
          %1974 = vsyncadd %s1965, %s1973
          %s1975 = smul.addr %s29, 128
          %s1976 = scalar_lea.hbm %s15, %s1975
          %s1978 = sshll.u32 %s1968, 4
          %s1979 = int_to_ptr.vmem [resolvable:$true] %s1978
          %1981 = dma.vmem_to_hbm [thread:$0]  %s1979, 128, %s1976, %s1965
        $region84: #{tpu_custom_call.1} parent=79 // pred_fallthru
          _
      $region80: #{tpu_custom_call.1} parent=5 // pred_fallthru
        _
      %p1982 = scmp.le.s32.totalorder 2, %s24
      // Predicated region
      $region85: #{tpu_custom_call.1} parent=5 // pred_check
        %p1983 = pneg %p1982
      $region86: #{tpu_custom_call.1} parent=5 // pred_check_branch
        %1985 = sbr.rel (%p1983) target = $region88
      $region87: #{tpu_custom_call.1} parent=5 // pred_region
        %s1986 = ssub.s32 %s24, 2
        // Predicated region
        $region89: #{tpu_custom_call.1} parent=87 // pred_check
          %p1987 = pneg %p383
        $region90: #{tpu_custom_call.1} parent=87 // pred_check_branch
          %1989 = sbr.rel (%p1987) target = $region92
        $region91: #{tpu_custom_call.1} parent=87 // pred_region
          %s1990 = sand.u32 %s368, 1
          %s1991 = scalar_lea.sflag [#allocation3], %s1990
          %s1992 = sand.u32 %s368, 1
          %s1993 = smul.addr %s1992, 8
          %s1994 = scalar_lea.vmem [#allocation2], %s1993
          %1995 = dma.done %s1991, 128
        $region92: #{tpu_custom_call.1} parent=87 // pred_fallthru
          _
      $region88: #{tpu_custom_call.1} parent=5 // pred_fallthru
        _
    $region6: #{tpu_custom_call.1} parent=1 // loop_footer
      %s28 = sadd.s32 1, %s24
    $region7: #{tpu_custom_call.1} parent=1 // loop_footer_branch
      %23 = sbr.rel target = $region3
    $region8: #{tpu_custom_call.1} parent=1 // loop_exit
      _
    %1996 = vsyncpa [#allocation3], 1
    %s1997 = scalar_lea.sflag [#allocation3], 1
    %1998 = vsyncpa %s1997, 1

</llo_original>
